<compile_context>
chip_gen: v7x
topology: tpu7x:2x2x1
jax: 0.10.0
libtpu: 0.0.40
codegen_flags: <defaults>
</compile_context>

<pallas_src>
import functools
import math

import jax
import jax.numpy as jnp
import numpy as np
from jax.experimental import pallas as pl
from jax.experimental.pallas import tpu as pltpu

_LANE = 128
_SUBLANE = 8
# Keep W fully VMEM-resident (single N/K block) below this many bf16 bytes.
_W_RESIDENT_BYTES = 8 * 1024 * 1024


@functools.lru_cache(maxsize=None)
def _num_tensorcores() -> int:
    """v7x (and v4) expose 2 TensorCores sharing a 'parallel' grid axis; on
    single-TC chips (v5e / v6e) splitting small grids is pure overhead."""
    try:
        kind = jax.devices()[0].device_kind.lower()
    except Exception:
        return 1
    return 2 if ("v7" in kind or "v4" in kind) else 1


def _pick_tile(n_rows, target=512):
    """Row tile: as large as possible (amortize ~0.35us/grid-step), balanced so
    the grid has >= num_tensorcores steps only on multi-TC chips."""
    steps = pl.cdiv(n_rows, target)
    if n_rows >= 2 * _SUBLANE:
        steps = max(steps, _num_tensorcores())
    tile = pl.cdiv(n_rows, steps)
    tile = -(-tile // _SUBLANE) * _SUBLANE
    return int(max(_SUBLANE, min(target, tile)))


# ----------------------------------------------------------------------------
# Generic Pallas kernel: (M, N, K)-tiled  A(T, K) @ W(K, N)  on the MXU.
# ----------------------------------------------------------------------------
def _matmul_kernel(a_ref, w_ref, o_ref, acc_ref):
    @pl.when(pl.program_id(2) == 0)
    def _init():
        acc_ref[...] = jnp.zeros_like(acc_ref)

    acc_ref[...] += jnp.dot(a_ref[...], w_ref[...],
                            preferred_element_type=jnp.float32)

    @pl.when(pl.program_id(2) == pl.num_programs(2) - 1)
    def _store():
        o_ref[...] = acc_ref[...]


def _pallas_matmul(a, w):
    """a: (T, K), w: (K, N)  ->  (T, N) float32.

    Streamed rows x resident/tiled matrix on the MXU. Operands travel as
    bfloat16 (halves HBM/DMA traffic and VMEM footprint); accumulation is
    float32 in a VMEM scratch. Large W (e.g. realistic sinc-resample kernels)
    is tiled over N and K so it never has to fit VMEM whole.
    """
    T, K = a.shape
    K2, N = w.shape
    assert K == K2
    a = a.astype(jnp.bfloat16)
    w = w.astype(jnp.bfloat16)

    n128 = pl.cdiv(N, _LANE) * _LANE
    resident = (K * n128 * 2 <= _W_RESIDENT_BYTES) and (n128 <= 2048) and (K <= 4096)
    if resident:
        tn, tk = n128, K                      # whole (lane-padded) W = one block
    else:
        tn = min(n128, 512)
        tk = min(pl.cdiv(K, _LANE) * _LANE, 1024)
    n_pad = pl.cdiv(n128, tn) * tn
    k_pad = pl.cdiv(K, tk) * tk
    tm = _pick_tile(T)
    t_pad = pl.cdiv(T, tm) * tm

    if (t_pad, k_pad) != (T, K):
        a = jnp.pad(a, ((0, t_pad - T), (0, k_pad - K)))
    if (k_pad, n_pad) != (K, N):
        w = jnp.pad(w, ((0, k_pad - K), (0, n_pad - N)))

    grid = (t_pad // tm, n_pad // tn, k_pad // tk)

    # 2x double-buffered A and W (bf16) + 2x output (f32) + f32 accumulator.
    need = (2 * tm * tk * 2 + 2 * tk * tn * 2 + 2 * tm * tn * 4
            + tm * tn * 4 + (4 << 20))
    vmem_limit = int(min(max(need, 32 << 20), 48 << 20))

    out = pl.pallas_call(
        _matmul_kernel,
        out_shape=jax.ShapeDtypeStruct((t_pad, n_pad), jnp.float32),
        grid_spec=pltpu.PrefetchScalarGridSpec(
            num_scalar_prefetch=0,
            grid=grid,
            in_specs=[
                pl.BlockSpec((tm, tk), lambda i, j, k: (i, k)),   # streamed rows
                # TODO(synk): single-buffer the grid-constant resident W block
                # (pl.Buffered(1)) once pipeline_mode is stable in this jax rev.
                pl.BlockSpec((tk, tn), lambda i, j, k: (k, j)),   # matrix tile
            ],
            out_specs=pl.BlockSpec((tm, tn), lambda i, j, k: (i, j)),
            scratch_shapes=[pltpu.VMEM((tm, tn), jnp.float32)],
        ),
        compiler_params=pltpu.CompilerParams(
            dimension_semantics=("parallel", "parallel", "arbitrary"),
            vmem_limit_bytes=vmem_limit),
    )(a, w)

    if (t_pad, n_pad) != (T, N):
        out = out[:T, :N]
    return out


# ----------------------------------------------------------------------------
# PitchShift module equivalent.
# ----------------------------------------------------------------------------
class PitchShiftPallas:
    def __init__(self, sample_rate, n_steps, bins_per_octave=12,
                 n_fft=512, win_length=None, hop_length=None):
        self.sample_rate = int(sample_rate)
        self.n_steps = n_steps
        self.bins_per_octave = bins_per_octave
        self.n_fft = n_fft
        self.win_length = win_length if win_length is not None else n_fft
        self.hop_length = (hop_length if hop_length is not None
                           else self.win_length // 4)
        self.n_freq = self.n_fft // 2 + 1

        # torch.hann_window(win_length): periodic Hann, zero-padded to n_fft
        # symmetrically (torch.stft behaviour when win_length < n_fft).
        n = np.arange(self.win_length, dtype=np.float64)
        win = 0.5 * (1.0 - np.cos(2.0 * math.pi * n / self.win_length))
        left = (self.n_fft - self.win_length) // 2
        win_full = np.zeros(self.n_fft, dtype=np.float64)
        win_full[left:left + self.win_length] = win
        self._window = win_full

        self.rate = 2.0 ** (-float(n_steps) / bins_per_octave)
        self.orig_freq = int(self.sample_rate / self.rate)
        self.gcd = math.gcd(int(self.orig_freq), int(self.sample_rate))

        # Structurally-zero imaginary bins (DC, and Nyquist for even n_fft) are
        # packed away: the [Re | Im] block is exactly n_fft wide.
        F = self.n_freq
        if self.n_fft % 2 == 0:
            self._im_lo, self._im_hi = 1, F - 1
        else:
            self._im_lo, self._im_hi = 1, F

        # Fused (analysis window * forward real-DFT): frames @ Wf -> [Re | Im].
        nn = np.arange(self.n_fft)[:, None].astype(np.float64)
        kk = np.arange(F)[None, :].astype(np.float64)
        ang = 2.0 * math.pi * nn * kk / self.n_fft              # (n_fft, F)
        cos_m = np.cos(ang) * win_full[:, None]
        sin_m = -np.sin(ang) * win_full[:, None]
        Wf = np.concatenate([cos_m, sin_m[:, self._im_lo:self._im_hi]], axis=1)
        assert Wf.shape == (self.n_fft, self.n_fft)
        self.Wf = jnp.asarray(Wf, dtype=jnp.bfloat16)           # (n_fft, n_fft)

        # Fused (inverse real-DFT * synthesis window): [Re | Im] @ Wi -> frame.
        a_k = np.full(F, 2.0)
        a_k[0] = 1.0
        if self.n_fft % 2 == 0:
            a_k[-1] = 1.0
        inv_cos = (a_k[:, None] * np.cos(ang.T)) / self.n_fft       # (F, n_fft)
        inv_sin = (-a_k[:, None] * np.sin(ang.T)) / self.n_fft
        Wi = np.concatenate([inv_cos, inv_sin[self._im_lo:self._im_hi]], axis=0)
        Wi = Wi * win_full[None, :]
        assert Wi.shape == (self.n_fft, self.n_fft)
        self.Wi = jnp.asarray(Wi, dtype=jnp.bfloat16)           # (n_fft, n_fft)

        # Sinc-interpolation resampling kernel (torchaudio defaults).
        if self.orig_freq != self.sample_rate:
            kernel, width = self._sinc_resample_kernel(
                self.orig_freq, self.sample_rate, self.gcd)
            self.Wr = jnp.asarray(kernel.T, dtype=jnp.bfloat16)  # (kw, new)
            self.res_width = width
        else:
            self.Wr = None
            self.res_width = 0

    @staticmethod
    def _sinc_resample_kernel(orig_freq, new_freq, gcd,
                              lowpass_filter_width=6, rolloff=0.99):
        orig_freq = int(orig_freq) // gcd
        new_freq = int(new_freq) // gcd
        base_freq = min(orig_freq, new_freq) * rolloff
        width = int(math.ceil(lowpass_filter_width * orig_freq / base_freq))
        idx = np.arange(-width, width + orig_freq, dtype=np.float64) / orig_freq
        t = (np.arange(0, -new_freq, -1, dtype=np.float64)[:, None] / new_freq
             + idx[None, :])
        t = t * base_freq
        t = np.clip(t, -lowpass_filter_width, lowpass_filter_width)
        window = np.cos(t * math.pi / lowpass_filter_width / 2) ** 2
        t = t * math.pi
        scale = base_freq / orig_freq
        safe_t = np.where(t == 0.0, 1.0, t)
        kernels = np.where(t == 0.0, 1.0, np.sin(safe_t) / safe_t)
        kernels = kernels * window * scale
        return kernels.astype(np.float32), width    # (new, 2*width + orig)

    # ------------------------------------------------------------------ STFT
    def _stft(self, x):
        B, _ = x.shape
        half = self.n_fft // 2
        hop = self.hop_length
        xp = jnp.pad(x.astype(jnp.bfloat16), ((0, 0), (half, half)),
                     mode="reflect")
        L = xp.shape[-1]
        n_frames = 1 + (L - self.n_fft) // hop

        # TODO(synk): framing still materializes frames at ~n_fft/hop x the
        # audio size in HBM; an in-kernel path (memory_space=pl.ANY + strided
        # pl.ds reads of a per-tile contiguous chunk) would cut that traffic.
        if self.n_fft % hop == 0:
            # Gather-free framing: hop-strided reshape + R lane-concats.
            R = self.n_fft // hop
            rows = n_frames + R - 1
            if rows * hop > L:
                xp = jnp.pad(xp, ((0, 0), (0, rows * hop - L)))
            X2 = xp[:, :rows * hop].reshape(B, rows, hop)
            frames = jnp.concatenate(
                [X2[:, k:k + n_frames, :] for k in range(R)], axis=-1)
        else:
            fidx = (np.arange(n_frames)[:, None] * hop
                    + np.arange(self.n_fft)[None, :]).astype(np.int32)
            frames = jnp.take(xp, jnp.asarray(fidx.reshape(-1)), axis=1)
            frames = frames.reshape(B, n_frames, self.n_fft)

        spec = _pallas_matmul(frames.reshape(B * n_frames, self.n_fft), self.Wf)
        spec = spec.reshape(B, n_frames, self.n_fft)     # time-major, packed
        F = self.n_freq
        re = spec[..., :F]
        z = jnp.zeros_like(spec[..., :1])
        im_parts = [z, spec[..., F:]] + ([z] if self.n_fft % 2 == 0 else [])
        im = jnp.concatenate(im_parts, axis=-1)
        return re, im                                    # (B, T, F)

    # --------------------------------------------------------- phase vocoder
    def _phase_vocoder(self, re, im):
        # Elementwise atan2/round/polar + a short cumsum over time; plain JAX
        # (no clean/beneficial Pallas mapping at this size). Time-major layout
        # keeps F on the lane axis and avoids all swapaxes copies.
        B, T, F = re.shape
        time_steps = np.arange(0, T, self.rate, dtype=np.float64)
        alphas = jnp.asarray((time_steps % 1.0)[None, :, None], jnp.float32)
        idx0 = jnp.asarray(time_steps.astype(np.int32))
        idx1 = idx0 + 1

        phase_adv = jnp.linspace(0.0, math.pi * self.hop_length, F,
                                 dtype=jnp.float32)[None, None, :]
        phase_0 = jnp.arctan2(im[:, :1, :], re[:, :1, :])        # (B, 1, F)

        re_p = jnp.pad(re, ((0, 0), (0, 2), (0, 0)))
        im_p = jnp.pad(im, ((0, 0), (0, 2), (0, 0)))
        re0, im0 = re_p[:, idx0, :], im_p[:, idx0, :]
        re1, im1 = re_p[:, idx1, :], im_p[:, idx1, :]

        angle0 = jnp.arctan2(im0, re0)
        angle1 = jnp.arctan2(im1, re1)
        norm0 = jnp.sqrt(re0 * re0 + im0 * im0)
        norm1 = jnp.sqrt(re1 * re1 + im1 * im1)

        phase = angle1 - angle0 - phase_adv
        phase = phase - 2.0 * math.pi * jnp.round(phase / (2.0 * math.pi))
        phase = phase + phase_adv
        phase = jnp.concatenate([phase_0, phase[:, :-1, :]], axis=1)
        phase_acc = jnp.cumsum(phase, axis=1)

        mag = alphas * norm1 + (1.0 - alphas) * norm0
        return mag * jnp.cos(phase_acc), mag * jnp.sin(phase_acc)   # (B, T', F)

    # ----------------------------------------------------------------- iSTFT
    def _istft(self, re, im, length):
        B, T, F = re.shape
        packed = jnp.concatenate([re, im[..., self._im_lo:self._im_hi]], axis=-1)
        yframes = _pallas_matmul(packed.reshape(B * T, self.n_fft), self.Wi)
        yframes = yframes.reshape(B, T, self.n_fft)

        hop = self.hop_length
        exp_len = self.n_fft + hop * (T - 1)

        if self.n_fft % hop == 0:
            # Overlap-add as R hop-strided pad+adds (vectorized; no scatter).
            R = self.n_fft // hop
            Y = yframes.reshape(B, T, R, hop)
            rows = T + R - 1
            y = jnp.zeros((B, rows, hop), jnp.float32)
            for k in range(R):
                y = y + jnp.pad(Y[:, :, k, :], ((0, 0), (k, R - 1 - k), (0, 0)))
            y = y.reshape(B, rows * hop)                 # rows*hop == exp_len
        else:
            # TODO(synk): scatter-add fallback when hop does not divide n_fft.
            pos = (np.arange(T)[:, None] * hop
                   + np.arange(self.n_fft)[None, :]).reshape(-1).astype(np.int32)
            y = jnp.zeros((B, exp_len), jnp.float32)
            y = y.at[:, jnp.asarray(pos)].add(yframes.reshape(B, -1))

        # Squared-window envelope: data-independent -> numpy constant at trace
        # time, with a nonzero guard (torch.istft asserts this is nonzero).
        win_sq = self._window.astype(np.float64) ** 2
        env = np.zeros(exp_len, np.float64)
        pos_np = (np.arange(T)[:, None] * hop
                  + np.arange(self.n_fft)[None, :]).reshape(-1)
        np.add.at(env, pos_np, np.tile(win_sq, T))
        start = self.n_fft // 2                          # center=True
        env_seg = env[start:start + length]
        env_seg = np.where(env_seg > 1e-11, env_seg, 1.0)
        inv_env = jnp.asarray((1.0 / env_seg).astype(np.float32))

        y = y[:, start:start + length]
        y = y * inv_env[None, :y.shape[-1]]
        if y.shape[-1] < length:
            y = jnp.pad(y, ((0, 0), (0, length - y.shape[-1])))
        return y

    # -------------------------------------------------------------- resample
    def _resample(self, y):
        B, length = y.shape
        orig = self.orig_freq // self.gcd
        new = self.sample_rate // self.gcd
        width = self.res_width
        kw = self.Wr.shape[0]                            # 2*width + orig
        yp = jnp.pad(y.astype(jnp.bfloat16), ((0, 0), (width, width + orig)))
        P = (yp.shape[-1] - kw) // orig + 1
        # TODO(synk): for realistic rates (orig>>1) an in-kernel strided-DMA
        # framing would avoid materializing the overlapping polyphase frames.
        ridx = (np.arange(P)[:, None] * orig
                + np.arange(kw)[None, :]).astype(np.int32)
        rframes = jnp.take(yp, jnp.asarray(ridx.reshape(-1)), axis=1)
        rframes = rframes.reshape(B * P, kw)
        res = _pallas_matmul(rframes, self.Wr)           # (B*P, new), N/K tiled
        res = res.reshape(B, P * new)
        target_length = int(math.ceil(new * length / orig))
        return res[:, :target_length]

    # --------------------------------------------------------------- forward
    def __call__(self, waveform):
        shape = waveform.shape
        ori_len = shape[-1]
        x = waveform.reshape(-1, ori_len).astype(jnp.float32)

        re, im = self._stft(x)
        re_s, im_s = self._phase_vocoder(re, im)
        len_stretch = int(round(ori_len / self.rate))
        y = self._istft(re_s, im_s, len_stretch)
        if self.Wr is not None:
            y = self._resample(y)

        out_len = y.shape[-1]
        if out_len > ori_len:
            y = y[:, :ori_len]
        else:
            y = jnp.pad(y, ((0, 0), (0, ori_len - out_len)))
        return y.reshape(shape)


if __name__ == "__main__":
    key = jax.random.PRNGKey(0)
    # Small synthetic audio: (batch=2, channels=4, time=256).
    waveform = jax.random.normal(key, (2, 4, 256), dtype=jnp.float32)

    # sample_rate=100, n_steps=4 gives a small 5:4 polyphase resample stage.
    transform = PitchShiftPallas(sample_rate=100, n_steps=4, bins_per_octave=12,
                                 n_fft=64, win_length=64, hop_length=16)
    pitch_shift = jax.jit(transform.__call__)
    out = pitch_shift(waveform)
    out = jax.block_until_ready(out)

    assert out.shape == waveform.shape, out.shape
    assert bool(jnp.all(jnp.isfinite(out)))

    # Sanity-check the fused, packed STFT Pallas kernel against an FFT
    # reference (bf16 operands; aggregate relative error).
    half = transform.n_fft // 2
    xr = jnp.pad(waveform.reshape(-1, 256), ((0, 0), (half, half)),
                 mode="reflect")
    n_frames = 1 + (xr.shape[-1] - transform.n_fft) // transform.hop_length
    fidx = (np.arange(n_frames)[:, None] * transform.hop_length
            + np.arange(transform.n_fft)[None, :]).astype(np.int32)
    raw_frames = xr[:, fidx]
    win = jnp.asarray(transform._window, dtype=jnp.float32)
    ref = jnp.fft.rfft(raw_frames * win, n=transform.n_fft, axis=-1)
    got = _pallas_matmul(raw_frames.reshape(-1, transform.n_fft), transform.Wf)
    F = transform.n_freq
    z = jnp.zeros((got.shape[0], 1), jnp.float32)
    im_parts = [z, got[:, F:]] + ([z] if transform.n_fft % 2 == 0 else [])
    got_c = (got[:, :F] + 1j * jnp.concatenate(im_parts, axis=-1))
    got_c = got_c.reshape(ref.shape)
    rel = float(jnp.linalg.norm(got_c - ref) / jnp.linalg.norm(ref))
    assert rel < 3e-2, rel

    # Loose energy sanity check on the full pitch-shift pipeline.
    rms_in = float(jnp.sqrt(jnp.mean(waveform ** 2)))
    rms_out = float(jnp.sqrt(jnp.mean(out ** 2)))
    assert 0.2 < rms_out / rms_in < 5.0, (rms_in, rms_out)

    print("KERNEL_OK")
</pallas_src>

<mosaic_0001>
module attributes {stable_mosaic.version = 11 : i64} {
  func.func @_matmul_kernel(%arg0: i32, %arg1: i32, %arg2: i32, %arg3: memref<136x64xbf16, #tpu.memory_space<vmem>>, %arg4: memref<64x128xbf16, #tpu.memory_space<vmem>>, %arg5: memref<136x128xf32, #tpu.memory_space<vmem>>, %arg6: memref<136x128xf32, #tpu.memory_space<vmem>>) attributes {dimension_semantics = [#tpu.dimension_semantics<parallel>, #tpu.dimension_semantics<parallel>, #tpu.dimension_semantics<arbitrary>], iteration_bounds = array<i64: 1, 1, 1>, scalar_prefetch = 0 : i64, scratch_operands = 1 : i64, tpu.core_type = #tpu.core_type<tc>, window_params = [{transform_indices = @transform_0, window_bounds = array<i64: 136, 64>}, {transform_indices = @transform_1, window_bounds = array<i64: 64, 128>}, {transform_indices = @transform_2, window_bounds = array<i64: 136, 128>}]} {
    %c0_i32 = arith.constant 0 : i32
    %0 = arith.cmpi eq, %arg2, %c0_i32 : i32
    %1 = arith.extui %0 : i1 to i32
    %c0_i32_0 = arith.constant 0 : i32
    %2 = arith.cmpi ne, %1, %c0_i32_0 : i32
    scf.if %2 {
      %cst_10 = arith.constant 0.000000e+00 : f32
      %12 = vector.broadcast %cst_10 : f32 to vector<136x128xf32>
      %c0_11 = arith.constant 0 : index
      %c0_12 = arith.constant 0 : index
      %13 = vector.load %arg6[%c0_11, %c0_12] : memref<136x128xf32, #tpu.memory_space<vmem>>, vector<136x128xf32>
      tpu.vector_store %arg6[%c0_11, %c0_12], %12 {strides = array<i32>} : memref<136x128xf32, #tpu.memory_space<vmem>>, vector<136x128xf32>,
    } else {
    }
    %c0 = arith.constant 0 : index
    %c0_1 = arith.constant 0 : index
    %3 = vector.load %arg6[%c0, %c0_1] : memref<136x128xf32, #tpu.memory_space<vmem>>, vector<136x128xf32>
    %c0_2 = arith.constant 0 : index
    %c0_3 = arith.constant 0 : index
    %4 = vector.load %arg3[%c0_2, %c0_3] : memref<136x64xbf16, #tpu.memory_space<vmem>>, vector<136x64xbf16>
    %c0_4 = arith.constant 0 : index
    %c0_5 = arith.constant 0 : index
    %5 = vector.load %arg4[%c0_4, %c0_5] : memref<64x128xbf16, #tpu.memory_space<vmem>>, vector<64x128xbf16>
    %cst = arith.constant dense<0.000000e+00> : vector<136x128xf32>
    %6 = tpu.matmul %4, %5, %cst {dimension_numbers = #tpu.dot_dimension_numbers<[1], [0], [0], [1], [0, 0, 1, 1], [], []>} : vector<136x64xbf16>, vector<64x128xbf16>, vector<136x128xf32> -> vector<136x128xf32>
    %7 = arith.addf %3, %6 : vector<136x128xf32>
    %c0_6 = arith.constant 0 : index
    %c0_7 = arith.constant 0 : index
    %8 = vector.load %arg6[%c0_6, %c0_7] : memref<136x128xf32, #tpu.memory_space<vmem>>, vector<136x128xf32>
    tpu.vector_store %arg6[%c0_6, %c0_7], %7 {strides = array<i32>} : memref<136x128xf32, #tpu.memory_space<vmem>>, vector<136x128xf32>,
    %c0_i32_8 = arith.constant 0 : i32
    %9 = arith.cmpi eq, %arg2, %c0_i32_8 : i32
    %10 = arith.extui %9 : i1 to i32
    %c0_i32_9 = arith.constant 0 : i32
    %11 = arith.cmpi ne, %10, %c0_i32_9 : i32
    scf.if %11 {
      %c0_10 = arith.constant 0 : index
      %c0_11 = arith.constant 0 : index
      %12 = vector.load %arg6[%c0_10, %c0_11] : memref<136x128xf32, #tpu.memory_space<vmem>>, vector<136x128xf32>
      %c0_12 = arith.constant 0 : index
      %c0_13 = arith.constant 0 : index
      %13 = vector.load %arg5[%c0_12, %c0_13] : memref<136x128xf32, #tpu.memory_space<vmem>>, vector<136x128xf32>
      tpu.vector_store %arg5[%c0_12, %c0_13], %12 {strides = array<i32>} : memref<136x128xf32, #tpu.memory_space<vmem>>, vector<136x128xf32>,
    } else {
    }
    return
  }
  func.func @transform_0(%arg0: i32, %arg1: i32, %arg2: i32) -> (i32, i32) {
    %c0_i32 = arith.constant 0 : i32
    return %arg0, %arg2 : i32, i32
  }
  func.func @transform_1(%arg0: i32, %arg1: i32, %arg2: i32) -> (i32, i32) {
    %c0_i32 = arith.constant 0 : i32
    return %arg2, %arg1 : i32, i32
  }
  func.func @transform_2(%arg0: i32, %arg1: i32, %arg2: i32) -> (i32, i32) {
    %c0_i32 = arith.constant 0 : i32
    return %arg0, %arg1 : i32, i32
  }
}

module attributes {stable_mosaic.version = 11 : i64} {
  func.func @_matmul_kernel(%arg0: i32, %arg1: i32, %arg2: i32, %arg3: memref<176x64xbf16, #tpu.memory_space<vmem>>, %arg4: memref<64x128xbf16, #tpu.memory_space<vmem>>, %arg5: memref<176x128xf32, #tpu.memory_space<vmem>>, %arg6: memref<176x128xf32, #tpu.memory_space<vmem>>) attributes {dimension_semantics = [#tpu.dimension_semantics<parallel>, #tpu.dimension_semantics<parallel>, #tpu.dimension_semantics<arbitrary>], iteration_bounds = array<i64: 1, 1, 1>, scalar_prefetch = 0 : i64, scratch_operands = 1 : i64, tpu.core_type = #tpu.core_type<tc>, window_params = [{transform_indices = @transform_0, window_bounds = array<i64: 176, 64>}, {transform_indices = @transform_1, window_bounds = array<i64: 64, 128>}, {transform_indices = @transform_2, window_bounds = array<i64: 176, 128>}]} {
    %c0_i32 = arith.constant 0 : i32
    %0 = arith.cmpi eq, %arg2, %c0_i32 : i32
    %1 = arith.extui %0 : i1 to i32
    %c0_i32_0 = arith.constant 0 : i32
    %2 = arith.cmpi ne, %1, %c0_i32_0 : i32
    scf.if %2 {
      %cst_10 = arith.constant 0.000000e+00 : f32
      %12 = vector.broadcast %cst_10 : f32 to vector<176x128xf32>
      %c0_11 = arith.constant 0 : index
      %c0_12 = arith.constant 0 : index
      %13 = vector.load %arg6[%c0_11, %c0_12] : memref<176x128xf32, #tpu.memory_space<vmem>>, vector<176x128xf32>
      tpu.vector_store %arg6[%c0_11, %c0_12], %12 {strides = array<i32>} : memref<176x128xf32, #tpu.memory_space<vmem>>, vector<176x128xf32>,
    } else {
    }
    %c0 = arith.constant 0 : index
    %c0_1 = arith.constant 0 : index
    %3 = vector.load %arg6[%c0, %c0_1] : memref<176x128xf32, #tpu.memory_space<vmem>>, vector<176x128xf32>
    %c0_2 = arith.constant 0 : index
    %c0_3 = arith.constant 0 : index
    %4 = vector.load %arg3[%c0_2, %c0_3] : memref<176x64xbf16, #tpu.memory_space<vmem>>, vector<176x64xbf16>
    %c0_4 = arith.constant 0 : index
    %c0_5 = arith.constant 0 : index
    %5 = vector.load %arg4[%c0_4, %c0_5] : memref<64x128xbf16, #tpu.memory_space<vmem>>, vector<64x128xbf16>
    %cst = arith.constant dense<0.000000e+00> : vector<176x128xf32>
    %6 = tpu.matmul %4, %5, %cst {dimension_numbers = #tpu.dot_dimension_numbers<[1], [0], [0], [1], [0, 0, 1, 1], [], []>} : vector<176x64xbf16>, vector<64x128xbf16>, vector<176x128xf32> -> vector<176x128xf32>
    %7 = arith.addf %3, %6 : vector<176x128xf32>
    %c0_6 = arith.constant 0 : index
    %c0_7 = arith.constant 0 : index
    %8 = vector.load %arg6[%c0_6, %c0_7] : memref<176x128xf32, #tpu.memory_space<vmem>>, vector<176x128xf32>
    tpu.vector_store %arg6[%c0_6, %c0_7], %7 {strides = array<i32>} : memref<176x128xf32, #tpu.memory_space<vmem>>, vector<176x128xf32>,
    %c0_i32_8 = arith.constant 0 : i32
    %9 = arith.cmpi eq, %arg2, %c0_i32_8 : i32
    %10 = arith.extui %9 : i1 to i32
    %c0_i32_9 = arith.constant 0 : i32
    %11 = arith.cmpi ne, %10, %c0_i32_9 : i32
    scf.if %11 {
      %c0_10 = arith.constant 0 : index
      %c0_11 = arith.constant 0 : index
      %12 = vector.load %arg6[%c0_10, %c0_11] : memref<176x128xf32, #tpu.memory_space<vmem>>, vector<176x128xf32>
      %c0_12 = arith.constant 0 : index
      %c0_13 = arith.constant 0 : index
      %13 = vector.load %arg5[%c0_12, %c0_13] : memref<176x128xf32, #tpu.memory_space<vmem>>, vector<176x128xf32>
      tpu.vector_store %arg5[%c0_12, %c0_13], %12 {strides = array<i32>} : memref<176x128xf32, #tpu.memory_space<vmem>>, vector<176x128xf32>,
    } else {
    }
    return
  }
  func.func @transform_0(%arg0: i32, %arg1: i32, %arg2: i32) -> (i32, i32) {
    %c0_i32 = arith.constant 0 : i32
    return %arg0, %arg2 : i32, i32
  }
  func.func @transform_1(%arg0: i32, %arg1: i32, %arg2: i32) -> (i32, i32) {
    %c0_i32 = arith.constant 0 : i32
    return %arg2, %arg1 : i32, i32
  }
  func.func @transform_2(%arg0: i32, %arg1: i32, %arg2: i32) -> (i32, i32) {
    %c0_i32 = arith.constant 0 : i32
    return %arg0, %arg1 : i32, i32
  }
}

module attributes {stable_mosaic.version = 11 : i64} {
  func.func @_matmul_kernel(%arg0: i32, %arg1: i32, %arg2: i32, %arg3: memref<264x21xbf16, #tpu.memory_space<vmem>>, %arg4: memref<21x128xbf16, #tpu.memory_space<vmem>>, %arg5: memref<264x128xf32, #tpu.memory_space<vmem>>, %arg6: memref<264x128xf32, #tpu.memory_space<vmem>>) attributes {dimension_semantics = [#tpu.dimension_semantics<parallel>, #tpu.dimension_semantics<parallel>, #tpu.dimension_semantics<arbitrary>], iteration_bounds = array<i64: 2, 1, 1>, scalar_prefetch = 0 : i64, scratch_operands = 1 : i64, tpu.core_type = #tpu.core_type<tc>, window_params = [{transform_indices = @transform_0, window_bounds = array<i64: 264, 21>}, {transform_indices = @transform_1, window_bounds = array<i64: 21, 128>}, {transform_indices = @transform_2, window_bounds = array<i64: 264, 128>}]} {
    %c0_i32 = arith.constant 0 : i32
    %0 = arith.cmpi eq, %arg2, %c0_i32 : i32
    %1 = arith.extui %0 : i1 to i32
    %c0_i32_0 = arith.constant 0 : i32
    %2 = arith.cmpi ne, %1, %c0_i32_0 : i32
    scf.if %2 {
      %cst_10 = arith.constant 0.000000e+00 : f32
      %12 = vector.broadcast %cst_10 : f32 to vector<264x128xf32>
      %c0_11 = arith.constant 0 : index
      %c0_12 = arith.constant 0 : index
      %13 = vector.load %arg6[%c0_11, %c0_12] : memref<264x128xf32, #tpu.memory_space<vmem>>, vector<264x128xf32>
      tpu.vector_store %arg6[%c0_11, %c0_12], %12 {strides = array<i32>} : memref<264x128xf32, #tpu.memory_space<vmem>>, vector<264x128xf32>,
    } else {
    }
    %c0 = arith.constant 0 : index
    %c0_1 = arith.constant 0 : index
    %3 = vector.load %arg6[%c0, %c0_1] : memref<264x128xf32, #tpu.memory_space<vmem>>, vector<264x128xf32>
    %c0_2 = arith.constant 0 : index
    %c0_3 = arith.constant 0 : index
    %4 = vector.load %arg3[%c0_2, %c0_3] : memref<264x21xbf16, #tpu.memory_space<vmem>>, vector<264x21xbf16>
    %c0_4 = arith.constant 0 : index
    %c0_5 = arith.constant 0 : index
    %5 = vector.load %arg4[%c0_4, %c0_5] : memref<21x128xbf16, #tpu.memory_space<vmem>>, vector<21x128xbf16>
    %cst = arith.constant dense<0.000000e+00> : vector<264x128xf32>
    %6 = tpu.matmul %4, %5, %cst {dimension_numbers = #tpu.dot_dimension_numbers<[1], [0], [0], [1], [0, 0, 1, 1], [], []>} : vector<264x21xbf16>, vector<21x128xbf16>, vector<264x128xf32> -> vector<264x128xf32>
    %7 = arith.addf %3, %6 : vector<264x128xf32>
    %c0_6 = arith.constant 0 : index
    %c0_7 = arith.constant 0 : index
    %8 = vector.load %arg6[%c0_6, %c0_7] : memref<264x128xf32, #tpu.memory_space<vmem>>, vector<264x128xf32>
    tpu.vector_store %arg6[%c0_6, %c0_7], %7 {strides = array<i32>} : memref<264x128xf32, #tpu.memory_space<vmem>>, vector<264x128xf32>,
    %c0_i32_8 = arith.constant 0 : i32
    %9 = arith.cmpi eq, %arg2, %c0_i32_8 : i32
    %10 = arith.extui %9 : i1 to i32
    %c0_i32_9 = arith.constant 0 : i32
    %11 = arith.cmpi ne, %10, %c0_i32_9 : i32
    scf.if %11 {
      %c0_10 = arith.constant 0 : index
      %c0_11 = arith.constant 0 : index
      %12 = vector.load %arg6[%c0_10, %c0_11] : memref<264x128xf32, #tpu.memory_space<vmem>>, vector<264x128xf32>
      %c0_12 = arith.constant 0 : index
      %c0_13 = arith.constant 0 : index
      %13 = vector.load %arg5[%c0_12, %c0_13] : memref<264x128xf32, #tpu.memory_space<vmem>>, vector<264x128xf32>
      tpu.vector_store %arg5[%c0_12, %c0_13], %12 {strides = array<i32>} : memref<264x128xf32, #tpu.memory_space<vmem>>, vector<264x128xf32>,
    } else {
    }
    return
  }
  func.func @transform_0(%arg0: i32, %arg1: i32, %arg2: i32) -> (i32, i32) {
    %c0_i32 = arith.constant 0 : i32
    return %arg0, %arg2 : i32, i32
  }
  func.func @transform_1(%arg0: i32, %arg1: i32, %arg2: i32) -> (i32, i32) {
    %c0_i32 = arith.constant 0 : i32
    return %arg2, %arg1 : i32, i32
  }
  func.func @transform_2(%arg0: i32, %arg1: i32, %arg2: i32) -> (i32, i32) {
    %c0_i32 = arith.constant 0 : i32
    return %arg0, %arg1 : i32, i32
  }
}

</mosaic_0001>

<llo_original>
// kernel: a_call__.3
$region0: #{a_call__.3}
  #allocation0 [shape = 'u32[]', space=smem, size = 0x4, offset = 0x4, fixed_abs, tag = 'smem constant byte address 0x4 - core index']
  #allocation1 [shape = 'u32[144,128]{1,0:T(1,128)}', space=vmem, size = 0x12000, scoped, tag = 'internal scratch']
  #allocation2 [shape = 'f32[136,128]{1,0:T(8,128)}', space=vmem, size = 0x11000, scoped, tag = 'scratch operand']
  %s0 = inlined_call_operand.vmem [shape: bf16[136,64], index: 0, kind: input, shape index: {}]
  %s1 = inlined_call_operand.vmem [shape: bf16[64,128], index: 1, kind: input, shape index: {}]
  %s2 = inlined_call_operand.vmem [shape: f32[136,128], index: 2, kind: output, shape index: {}]
  %s3 = sld [smem:[#allocation0]]
  $region26: #{a_call__.3} parent=0
    _
  %s5 = ssub.s32 1, %s3
  %s6 = scalar_select 0, %s5, %s3
  // Predicated region
  $region2: #{a_call__.3} parent=0 // pred_check
    _
  $region3: #{a_call__.3} parent=0 // pred_check_branch
    %8 = sbr.rel (0) target = $region5
  $region4: #{a_call__.3} parent=0 // pred_region
    _
  $region5: #{a_call__.3} parent=0 // pred_fallthru
    _
  // Predicated region
  $region6: #{a_call__.3} parent=0 // pred_check
    _
  $region7: #{a_call__.3} parent=0 // pred_check_branch
    %10 = sbr.rel (0) target = $region9
  $region8: #{a_call__.3} parent=0 // pred_region
    _
  $region9: #{a_call__.3} parent=0 // pred_fallthru
    _
  %p12 = scmp.eq.s32.totalorder 0, 0
  // Predicated region
  $region10: #{a_call__.3} parent=0 // pred_check
    %p13 = pneg %p12
  $region11: #{a_call__.3} parent=0 // pred_check_branch
    %15 = sbr.rel (%p13) target = $region13
  $region12: #{a_call__.3} parent=0 // pred_region
    %16 = vst [vmem:[#allocation2] sm:$0xff] 0.0
    %17 = vst [vmem:[#allocation2 + $0x8] sm:$0xff] 0.0
    %18 = vst [vmem:[#allocation2 + $0x10] sm:$0xff] 0.0
    %19 = vst [vmem:[#allocation2 + $0x18] sm:$0xff] 0.0
    %20 = vst [vmem:[#allocation2 + $0x20] sm:$0xff] 0.0
    %21 = vst [vmem:[#allocation2 + $0x28] sm:$0xff] 0.0
    %22 = vst [vmem:[#allocation2 + $0x30] sm:$0xff] 0.0
    %23 = vst [vmem:[#allocation2 + $0x38] sm:$0xff] 0.0
    %24 = vst [vmem:[#allocation2 + $0x40] sm:$0xff] 0.0
    %25 = vst [vmem:[#allocation2 + $0x48] sm:$0xff] 0.0
    %26 = vst [vmem:[#allocation2 + $0x50] sm:$0xff] 0.0
    %27 = vst [vmem:[#allocation2 + $0x58] sm:$0xff] 0.0
    %28 = vst [vmem:[#allocation2 + $0x60] sm:$0xff] 0.0
    %29 = vst [vmem:[#allocation2 + $0x68] sm:$0xff] 0.0
    %30 = vst [vmem:[#allocation2 + $0x70] sm:$0xff] 0.0
    %31 = vst [vmem:[#allocation2 + $0x78] sm:$0xff] 0.0
    %32 = vst [vmem:[#allocation2 + $0x80] sm:$0xff] 0.0
  $region13: #{a_call__.3} parent=0 // pred_fallthru
    _
  %v33 = vld [vmem:[#allocation2] sm:$0xff]
  %v34 = vld [vmem:[#allocation2 + $0x8] sm:$0xff]
  %v35 = vld [vmem:[#allocation2 + $0x10] sm:$0xff]
  %v36 = vld [vmem:[#allocation2 + $0x18] sm:$0xff]
  %v37 = vld [vmem:[#allocation2 + $0x20] sm:$0xff]
  %v38 = vld [vmem:[#allocation2 + $0x28] sm:$0xff]
  %v39 = vld [vmem:[#allocation2 + $0x30] sm:$0xff]
  %v40 = vld [vmem:[#allocation2 + $0x38] sm:$0xff]
  %v41 = vld [vmem:[#allocation2 + $0x40] sm:$0xff]
  %v42 = vld [vmem:[#allocation2 + $0x48] sm:$0xff]
  %v43 = vld [vmem:[#allocation2 + $0x50] sm:$0xff]
  %v44 = vld [vmem:[#allocation2 + $0x58] sm:$0xff]
  %v45 = vld [vmem:[#allocation2 + $0x60] sm:$0xff]
  %v46 = vld [vmem:[#allocation2 + $0x68] sm:$0xff]
  %v47 = vld [vmem:[#allocation2 + $0x70] sm:$0xff]
  %v48 = vld [vmem:[#allocation2 + $0x78] sm:$0xff]
  %v49 = vld [vmem:[#allocation2 + $0x80] sm:$0xff]
  %v50 = vld [vmem:[%s0] sm:$0xf]
  %v51 = vld [vmem:[%s0 + $0x4] sm:$0xf]
  %v52 = vld [vmem:[%s0 + $0x8] sm:$0xf]
  %v53 = vld [vmem:[%s0 + $0xc] sm:$0xf]
  %v54 = vld [vmem:[%s0 + $0x10] sm:$0xf]
  %v55 = vld [vmem:[%s0 + $0x14] sm:$0xf]
  %v56 = vld [vmem:[%s0 + $0x18] sm:$0xf]
  %v57 = vld [vmem:[%s0 + $0x1c] sm:$0xf]
  %v58 = vld [vmem:[%s0 + $0x20] sm:$0xf]
  %v59 = vld [vmem:[%s0 + $0x24] sm:$0xf]
  %v60 = vld [vmem:[%s0 + $0x28] sm:$0xf]
  %v61 = vld [vmem:[%s0 + $0x2c] sm:$0xf]
  %v62 = vld [vmem:[%s0 + $0x30] sm:$0xf]
  %v63 = vld [vmem:[%s0 + $0x34] sm:$0xf]
  %v64 = vld [vmem:[%s0 + $0x38] sm:$0xf]
  %v65 = vld [vmem:[%s0 + $0x3c] sm:$0xf]
  %v66 = vld [vmem:[%s0 + $0x40] sm:$0xf]
  %v67 = vld [vmem:[%s1] sm:$0xf]
  %v68 = vld [vmem:[%s1 + $0x4] sm:$0xf]
  %v69 = vld [vmem:[%s1 + $0x8] sm:$0xf]
  %v70 = vld [vmem:[%s1 + $0xc] sm:$0xf]
  %v71 = vld [vmem:[%s1 + $0x10] sm:$0xf]
  %v72 = vld [vmem:[%s1 + $0x14] sm:$0xf]
  %v73 = vld [vmem:[%s1 + $0x18] sm:$0xf]
  %v74 = vld [vmem:[%s1 + $0x1c] sm:$0xf]
  %v92 = vunpack.c.l.b16 %v50
  %v93 = vunpack.c.l.b16 %v51
  %v94 = vunpack.c.l.b16 %v52
  %v95 = vunpack.c.l.b16 %v53
  %v96 = vunpack.c.l.b16 %v54
  %v97 = vunpack.c.l.b16 %v55
  %v98 = vunpack.c.l.b16 %v56
  %v99 = vunpack.c.l.b16 %v57
  %v100 = vunpack.c.l.b16 %v58
  %v101 = vunpack.c.l.b16 %v59
  %v102 = vunpack.c.l.b16 %v60
  %v103 = vunpack.c.l.b16 %v61
  %v104 = vunpack.c.l.b16 %v62
  %v105 = vunpack.c.l.b16 %v63
  %v106 = vunpack.c.l.b16 %v64
  %v107 = vunpack.c.l.b16 %v65
  %v108 = vunpack.c.l.b16 %v66
  %v109 = vpack.c.b16 %v93, %v92
  %v110 = vpack.c.b16 %v95, %v94
  %v111 = vpack.c.b16 %v97, %v96
  %v112 = vpack.c.b16 %v99, %v98
  %v113 = vpack.c.b16 %v101, %v100
  %v114 = vpack.c.b16 %v103, %v102
  %v115 = vpack.c.b16 %v105, %v104
  %v116 = vpack.c.b16 %v107, %v106
  %v117 = vpack.c.b16 %v108, %v108
  %v126 = vunpack.c.l.b16 %v67
  %v127 = vunpack.c.l.b16 %v68
  %v128 = vunpack.c.l.b16 %v69
  %v129 = vunpack.c.l.b16 %v70
  %v130 = vunpack.c.l.b16 %v71
  %v131 = vunpack.c.l.b16 %v72
  %v132 = vunpack.c.l.b16 %v73
  %v133 = vunpack.c.l.b16 %v74
  %v134 = vpack.c.b16 %v127, %v126
  %v135 = vpack.c.b16 %v129, %v128
  %v136 = vpack.c.b16 %v131, %v130
  %v137 = vpack.c.b16 %v133, %v132
  %vm142 = vcmask 523264
  %v144 = vsel %vm142, %v109, 0
  %v147 = vsel %vm142, %v110, 0
  %v150 = vsel %vm142, %v111, 0
  %v153 = vsel %vm142, %v112, 0
  %v156 = vsel %vm142, %v113, 0
  %v159 = vsel %vm142, %v114, 0
  %v162 = vsel %vm142, %v115, 0
  %v165 = vsel %vm142, %v116, 0
  %v168 = vsel %vm142, %v117, 0
  %170 = vmatprep.subr.bf16.mxu0 0
  %171 = vmatpush1.bf16.msra.mxu0 %v134
  %172 = vmatprep.subr.bf16.mxu0 0
  %173 = vmatpush1.bf16.msra.mxu0 %v135
  %174 = vmatprep.subr.bf16.mxu0 0
  %175 = vmatpush1.bf16.msra.mxu0 %v136
  %176 = vmatprep.subr.bf16.mxu0 0
  %177 = vmatpush1.bf16.msra.mxu0 %v137
  %178 = vmatprep.subr.bf16.mxu0 0
  %179 = vmatpush1.bf16.msra.mxu0 0
  %180 = vmatprep.subr.bf16.mxu0 0
  %181 = vmatpush1.bf16.msra.mxu0 0
  %182 = vmatprep.subr.bf16.mxu0 0
  %183 = vmatpush1.bf16.msra.mxu0 0
  %184 = vmatprep.subr.bf16.mxu0 0
  %185 = vmatpush1.bf16.msra.mxu0 0
  %186 = vmatprep.subr.bf16.mxu0 0
  %187 = vmatpush1.bf16.msra.mxu0 0
  %188 = vmatprep.subr.bf16.mxu0 0
  %189 = vmatpush1.bf16.msra.mxu0 0
  %190 = vmatprep.subr.bf16.mxu0 0
  %191 = vmatpush1.bf16.msra.mxu0 0
  %192 = vmatprep.subr.bf16.mxu0 0
  %193 = vmatpush1.bf16.msra.mxu0 0
  %194 = vmatprep.subr.bf16.mxu0 0
  %195 = vmatpush1.bf16.msra.mxu0 0
  %196 = vmatprep.subr.bf16.mxu0 0
  %197 = vmatpush1.bf16.msra.mxu0 0
  %198 = vmatprep.subr.bf16.mxu0 0
  %199 = vmatpush1.bf16.msra.mxu0 0
  %200 = vmatprep.subr.bf16.mxu0 0
  %201 = vmatpush1.bf16.msra.mxu0 0
  %202 = vmatprep.mubr.bf16.mxu0 0
  %203 = vmatmul.mubr.bf16.gmra.mrb[0].mxu0 %v144
  %v204 = vpop.f32.mrb[0].mxu0
  %v205 = vadd.f32 0.0, %v204
  %v206 = vpop.f32.mrb[0].mxu0
  %v207 = vpop.f32.mrb[0].mxu0
  %v208 = vadd.f32 0.0, %v207
  %v209 = vpop.f32.mrb[0].mxu0
  %210 = vmatprep.mubr.bf16.mxu0 0
  %211 = vmatmul.mubr.bf16.gmra.mrb[0].mxu0 %v147
  %v212 = vpop.f32.mrb[0].mxu0
  %v213 = vadd.f32 0.0, %v212
  %v214 = vpop.f32.mrb[0].mxu0
  %v215 = vpop.f32.mrb[0].mxu0
  %v216 = vadd.f32 0.0, %v215
  %v217 = vpop.f32.mrb[0].mxu0
  %218 = vmatprep.mubr.bf16.mxu0 0
  %219 = vmatmul.mubr.bf16.gmra.mrb[0].mxu0 %v150
  %v220 = vpop.f32.mrb[0].mxu0
  %v221 = vadd.f32 0.0, %v220
  %v222 = vpop.f32.mrb[0].mxu0
  %v223 = vpop.f32.mrb[0].mxu0
  %v224 = vadd.f32 0.0, %v223
  %v225 = vpop.f32.mrb[0].mxu0
  %226 = vmatprep.mubr.bf16.mxu0 0
  %227 = vmatmul.mubr.bf16.gmra.mrb[0].mxu0 %v153
  %v228 = vpop.f32.mrb[0].mxu0
  %v229 = vadd.f32 0.0, %v228
  %v230 = vpop.f32.mrb[0].mxu0
  %v231 = vpop.f32.mrb[0].mxu0
  %v232 = vadd.f32 0.0, %v231
  %v233 = vpop.f32.mrb[0].mxu0
  %234 = vmatprep.mubr.bf16.mxu0 0
  %235 = vmatmul.mubr.bf16.gmra.mrb[0].mxu0 %v156
  %v236 = vpop.f32.mrb[0].mxu0
  %v237 = vadd.f32 0.0, %v236
  %v238 = vpop.f32.mrb[0].mxu0
  %v239 = vpop.f32.mrb[0].mxu0
  %v240 = vadd.f32 0.0, %v239
  %v241 = vpop.f32.mrb[0].mxu0
  %242 = vmatprep.mubr.bf16.mxu0 0
  %243 = vmatmul.mubr.bf16.gmra.mrb[0].mxu0 %v159
  %v244 = vpop.f32.mrb[0].mxu0
  %v245 = vadd.f32 0.0, %v244
  %v246 = vpop.f32.mrb[0].mxu0
  %v247 = vpop.f32.mrb[0].mxu0
  %v248 = vadd.f32 0.0, %v247
  %v249 = vpop.f32.mrb[0].mxu0
  %250 = vmatprep.mubr.bf16.mxu0 0
  %251 = vmatmul.mubr.bf16.gmra.mrb[0].mxu0 %v162
  %v252 = vpop.f32.mrb[0].mxu0
  %v253 = vadd.f32 0.0, %v252
  %v254 = vpop.f32.mrb[0].mxu0
  %v255 = vpop.f32.mrb[0].mxu0
  %v256 = vadd.f32 0.0, %v255
  %v257 = vpop.f32.mrb[0].mxu0
  %258 = vmatprep.mubr.bf16.mxu0 0
  %259 = vmatmul.mubr.bf16.gmra.mrb[0].mxu0 %v165
  %v260 = vpop.f32.mrb[0].mxu0
  %v261 = vadd.f32 0.0, %v260
  %v262 = vpop.f32.mrb[0].mxu0
  %v263 = vpop.f32.mrb[0].mxu0
  %v264 = vadd.f32 0.0, %v263
  %v265 = vpop.f32.mrb[0].mxu0
  %266 = vmatprep.mubr.bf16.mxu0 0
  %267 = vmatmul.mubr.bf16.gmra.mrb[0].mxu0 %v168
  %v268 = vpop.f32.mrb[0].mxu0
  %v269 = vadd.f32 0.0, %v268
  %v270 = vpop.f32.mrb[0].mxu0
  %v271 = vpop.f32.mrb[0].mxu0
  %v272 = vpop.f32.mrb[0].mxu0
  %273 = vdwg.mxu0
  %v274 = vadd.f32 %v33, %v205
  %v275 = vadd.f32 %v34, %v208
  %v276 = vadd.f32 %v35, %v213
  %v277 = vadd.f32 %v36, %v216
  %v278 = vadd.f32 %v37, %v221
  %v279 = vadd.f32 %v38, %v224
  %v280 = vadd.f32 %v39, %v229
  %v281 = vadd.f32 %v40, %v232
  %v282 = vadd.f32 %v41, %v237
  %v283 = vadd.f32 %v42, %v240
  %v284 = vadd.f32 %v43, %v245
  %v285 = vadd.f32 %v44, %v248
  %v286 = vadd.f32 %v45, %v253
  %v287 = vadd.f32 %v46, %v256
  %v288 = vadd.f32 %v47, %v261
  %v289 = vadd.f32 %v48, %v264
  %v290 = vadd.f32 %v49, %v269
  %291 = vst [vmem:[#allocation2] sm:$0xff] %v274
  %292 = vst [vmem:[#allocation2 + $0x8] sm:$0xff] %v275
  %293 = vst [vmem:[#allocation2 + $0x10] sm:$0xff] %v276
  %294 = vst [vmem:[#allocation2 + $0x18] sm:$0xff] %v277
  %295 = vst [vmem:[#allocation2 + $0x20] sm:$0xff] %v278
  %296 = vst [vmem:[#allocation2 + $0x28] sm:$0xff] %v279
  %297 = vst [vmem:[#allocation2 + $0x30] sm:$0xff] %v280
  %298 = vst [vmem:[#allocation2 + $0x38] sm:$0xff] %v281
  %299 = vst [vmem:[#allocation2 + $0x40] sm:$0xff] %v282
  %300 = vst [vmem:[#allocation2 + $0x48] sm:$0xff] %v283
  %301 = vst [vmem:[#allocation2 + $0x50] sm:$0xff] %v284
  %302 = vst [vmem:[#allocation2 + $0x58] sm:$0xff] %v285
  %303 = vst [vmem:[#allocation2 + $0x60] sm:$0xff] %v286
  %304 = vst [vmem:[#allocation2 + $0x68] sm:$0xff] %v287
  %305 = vst [vmem:[#allocation2 + $0x70] sm:$0xff] %v288
  %306 = vst [vmem:[#allocation2 + $0x78] sm:$0xff] %v289
  %307 = vst [vmem:[#allocation2 + $0x80] sm:$0xff] %v290
  // Predicated region
  $region14: #{a_call__.3} parent=0 // pred_check
    %p308 = pneg %p12
  $region15: #{a_call__.3} parent=0 // pred_check_branch
    %310 = sbr.rel (%p308) target = $region17
  $region16: #{a_call__.3} parent=0 // pred_region
    %v311 = vld [vmem:[#allocation2] sm:$0xff]
    %v312 = vld [vmem:[#allocation2 + $0x8] sm:$0xff]
    %v313 = vld [vmem:[#allocation2 + $0x10] sm:$0xff]
    %v314 = vld [vmem:[#allocation2 + $0x18] sm:$0xff]
    %v315 = vld [vmem:[#allocation2 + $0x20] sm:$0xff]
    %v316 = vld [vmem:[#allocation2 + $0x28] sm:$0xff]
    %v317 = vld [vmem:[#allocation2 + $0x30] sm:$0xff]
    %v318 = vld [vmem:[#allocation2 + $0x38] sm:$0xff]
    %v319 = vld [vmem:[#allocation2 + $0x40] sm:$0xff]
    %v320 = vld [vmem:[#allocation2 + $0x48] sm:$0xff]
    %v321 = vld [vmem:[#allocation2 + $0x50] sm:$0xff]
    %v322 = vld [vmem:[#allocation2 + $0x58] sm:$0xff]
    %v323 = vld [vmem:[#allocation2 + $0x60] sm:$0xff]
    %v324 = vld [vmem:[#allocation2 + $0x68] sm:$0xff]
    %v325 = vld [vmem:[#allocation2 + $0x70] sm:$0xff]
    %v326 = vld [vmem:[#allocation2 + $0x78] sm:$0xff]
    %v327 = vld [vmem:[#allocation2 + $0x80] sm:$0xff]
    %328 = vst [vmem:[%s2] sm:$0xff] %v311
    %329 = vst [vmem:[%s2 + $0x8] sm:$0xff] %v312
    %330 = vst [vmem:[%s2 + $0x10] sm:$0xff] %v313
    %331 = vst [vmem:[%s2 + $0x18] sm:$0xff] %v314
    %332 = vst [vmem:[%s2 + $0x20] sm:$0xff] %v315
    %333 = vst [vmem:[%s2 + $0x28] sm:$0xff] %v316
    %334 = vst [vmem:[%s2 + $0x30] sm:$0xff] %v317
    %335 = vst [vmem:[%s2 + $0x38] sm:$0xff] %v318
    %336 = vst [vmem:[%s2 + $0x40] sm:$0xff] %v319
    %337 = vst [vmem:[%s2 + $0x48] sm:$0xff] %v320
    %338 = vst [vmem:[%s2 + $0x50] sm:$0xff] %v321
    %339 = vst [vmem:[%s2 + $0x58] sm:$0xff] %v322
    %340 = vst [vmem:[%s2 + $0x60] sm:$0xff] %v323
    %341 = vst [vmem:[%s2 + $0x68] sm:$0xff] %v324
    %342 = vst [vmem:[%s2 + $0x70] sm:$0xff] %v325
    %343 = vst [vmem:[%s2 + $0x78] sm:$0xff] %v326
    %344 = vst [vmem:[%s2 + $0x80] sm:$0xff] %v327
  $region17: #{a_call__.3} parent=0 // pred_fallthru
    _
  // Predicated region
  $region18: #{a_call__.3} parent=0 // pred_check
    _
  $region19: #{a_call__.3} parent=0 // pred_check_branch
    %346 = sbr.rel (0) target = $region21
  $region20: #{a_call__.3} parent=0 // pred_region
    _
  $region21: #{a_call__.3} parent=0 // pred_fallthru
    _
  // Predicated region
  $region22: #{a_call__.3} parent=0 // pred_check
    _
  $region23: #{a_call__.3} parent=0 // pred_check_branch
    %348 = sbr.rel (0) target = $region25
  $region24: #{a_call__.3} parent=0 // pred_region
    _
  $region25: #{a_call__.3} parent=0 // pred_fallthru
    _

// kernel: a_call__.4
$region0: #{a_call__.4}
  #allocation0 [shape = 'u32[]', space=smem, size = 0x4, offset = 0x4, fixed_abs, tag = 'smem constant byte address 0x4 - core index']
  #allocation1 [shape = 'u32[144,128]{1,0:T(1,128)}', space=vmem, size = 0x12000, scoped, tag = 'internal scratch']
  #allocation2 [shape = 'f32[176,128]{1,0:T(8,128)}', space=vmem, size = 0x16000, scoped, tag = 'scratch operand']
  %s0 = inlined_call_operand.vmem [shape: bf16[176,64], index: 0, kind: input, shape index: {}]
  %s1 = inlined_call_operand.vmem [shape: bf16[64,128], index: 1, kind: input, shape index: {}]
  %s2 = inlined_call_operand.vmem [shape: f32[176,128], index: 2, kind: output, shape index: {}]
  %s3 = sld [smem:[#allocation0]]
  $region26: #{a_call__.4} parent=0
    _
  %s5 = ssub.s32 1, %s3
  %s6 = scalar_select 0, %s5, %s3
  // Predicated region
  $region2: #{a_call__.4} parent=0 // pred_check
    _
  $region3: #{a_call__.4} parent=0 // pred_check_branch
    %8 = sbr.rel (0) target = $region5
  $region4: #{a_call__.4} parent=0 // pred_region
    _
  $region5: #{a_call__.4} parent=0 // pred_fallthru
    _
  // Predicated region
  $region6: #{a_call__.4} parent=0 // pred_check
    _
  $region7: #{a_call__.4} parent=0 // pred_check_branch
    %10 = sbr.rel (0) target = $region9
  $region8: #{a_call__.4} parent=0 // pred_region
    _
  $region9: #{a_call__.4} parent=0 // pred_fallthru
    _
  %p12 = scmp.eq.s32.totalorder 0, 0
  // Predicated region
  $region10: #{a_call__.4} parent=0 // pred_check
    %p13 = pneg %p12
  $region11: #{a_call__.4} parent=0 // pred_check_branch
    %15 = sbr.rel (%p13) target = $region13
  $region12: #{a_call__.4} parent=0 // pred_region
    %16 = vst [vmem:[#allocation2] sm:$0xff] 0.0
    %17 = vst [vmem:[#allocation2 + $0x8] sm:$0xff] 0.0
    %18 = vst [vmem:[#allocation2 + $0x10] sm:$0xff] 0.0
    %19 = vst [vmem:[#allocation2 + $0x18] sm:$0xff] 0.0
    %20 = vst [vmem:[#allocation2 + $0x20] sm:$0xff] 0.0
    %21 = vst [vmem:[#allocation2 + $0x28] sm:$0xff] 0.0
    %22 = vst [vmem:[#allocation2 + $0x30] sm:$0xff] 0.0
    %23 = vst [vmem:[#allocation2 + $0x38] sm:$0xff] 0.0
    %24 = vst [vmem:[#allocation2 + $0x40] sm:$0xff] 0.0
    %25 = vst [vmem:[#allocation2 + $0x48] sm:$0xff] 0.0
    %26 = vst [vmem:[#allocation2 + $0x50] sm:$0xff] 0.0
    %27 = vst [vmem:[#allocation2 + $0x58] sm:$0xff] 0.0
    %28 = vst [vmem:[#allocation2 + $0x60] sm:$0xff] 0.0
    %29 = vst [vmem:[#allocation2 + $0x68] sm:$0xff] 0.0
    %30 = vst [vmem:[#allocation2 + $0x70] sm:$0xff] 0.0
    %31 = vst [vmem:[#allocation2 + $0x78] sm:$0xff] 0.0
    %32 = vst [vmem:[#allocation2 + $0x80] sm:$0xff] 0.0
    %33 = vst [vmem:[#allocation2 + $0x88] sm:$0xff] 0.0
    %34 = vst [vmem:[#allocation2 + $0x90] sm:$0xff] 0.0
    %35 = vst [vmem:[#allocation2 + $0x98] sm:$0xff] 0.0
    %36 = vst [vmem:[#allocation2 + $0xa0] sm:$0xff] 0.0
    %37 = vst [vmem:[#allocation2 + $0xa8] sm:$0xff] 0.0
  $region13: #{a_call__.4} parent=0 // pred_fallthru
    _
  %v38 = vld [vmem:[#allocation2] sm:$0xff]
  %v39 = vld [vmem:[#allocation2 + $0x8] sm:$0xff]
  %v40 = vld [vmem:[#allocation2 + $0x10] sm:$0xff]
  %v41 = vld [vmem:[#allocation2 + $0x18] sm:$0xff]
  %v42 = vld [vmem:[#allocation2 + $0x20] sm:$0xff]
  %v43 = vld [vmem:[#allocation2 + $0x28] sm:$0xff]
  %v44 = vld [vmem:[#allocation2 + $0x30] sm:$0xff]
  %v45 = vld [vmem:[#allocation2 + $0x38] sm:$0xff]
  %v46 = vld [vmem:[#allocation2 + $0x40] sm:$0xff]
  %v47 = vld [vmem:[#allocation2 + $0x48] sm:$0xff]
  %v48 = vld [vmem:[#allocation2 + $0x50] sm:$0xff]
  %v49 = vld [vmem:[#allocation2 + $0x58] sm:$0xff]
  %v50 = vld [vmem:[#allocation2 + $0x60] sm:$0xff]
  %v51 = vld [vmem:[#allocation2 + $0x68] sm:$0xff]
  %v52 = vld [vmem:[#allocation2 + $0x70] sm:$0xff]
  %v53 = vld [vmem:[#allocation2 + $0x78] sm:$0xff]
  %v54 = vld [vmem:[#allocation2 + $0x80] sm:$0xff]
  %v55 = vld [vmem:[#allocation2 + $0x88] sm:$0xff]
  %v56 = vld [vmem:[#allocation2 + $0x90] sm:$0xff]
  %v57 = vld [vmem:[#allocation2 + $0x98] sm:$0xff]
  %v58 = vld [vmem:[#allocation2 + $0xa0] sm:$0xff]
  %v59 = vld [vmem:[#allocation2 + $0xa8] sm:$0xff]
  %v60 = vld [vmem:[%s0] sm:$0xf]
  %v61 = vld [vmem:[%s0 + $0x4] sm:$0xf]
  %v62 = vld [vmem:[%s0 + $0x8] sm:$0xf]
  %v63 = vld [vmem:[%s0 + $0xc] sm:$0xf]
  %v64 = vld [vmem:[%s0 + $0x10] sm:$0xf]
  %v65 = vld [vmem:[%s0 + $0x14] sm:$0xf]
  %v66 = vld [vmem:[%s0 + $0x18] sm:$0xf]
  %v67 = vld [vmem:[%s0 + $0x1c] sm:$0xf]
  %v68 = vld [vmem:[%s0 + $0x20] sm:$0xf]
  %v69 = vld [vmem:[%s0 + $0x24] sm:$0xf]
  %v70 = vld [vmem:[%s0 + $0x28] sm:$0xf]
  %v71 = vld [vmem:[%s0 + $0x2c] sm:$0xf]
  %v72 = vld [vmem:[%s0 + $0x30] sm:$0xf]
  %v73 = vld [vmem:[%s0 + $0x34] sm:$0xf]
  %v74 = vld [vmem:[%s0 + $0x38] sm:$0xf]
  %v75 = vld [vmem:[%s0 + $0x3c] sm:$0xf]
  %v76 = vld [vmem:[%s0 + $0x40] sm:$0xf]
  %v77 = vld [vmem:[%s0 + $0x44] sm:$0xf]
  %v78 = vld [vmem:[%s0 + $0x48] sm:$0xf]
  %v79 = vld [vmem:[%s0 + $0x4c] sm:$0xf]
  %v80 = vld [vmem:[%s0 + $0x50] sm:$0xf]
  %v81 = vld [vmem:[%s0 + $0x54] sm:$0xf]
  %v82 = vld [vmem:[%s1] sm:$0xf]
  %v83 = vld [vmem:[%s1 + $0x4] sm:$0xf]
  %v84 = vld [vmem:[%s1 + $0x8] sm:$0xf]
  %v85 = vld [vmem:[%s1 + $0xc] sm:$0xf]
  %v86 = vld [vmem:[%s1 + $0x10] sm:$0xf]
  %v87 = vld [vmem:[%s1 + $0x14] sm:$0xf]
  %v88 = vld [vmem:[%s1 + $0x18] sm:$0xf]
  %v89 = vld [vmem:[%s1 + $0x1c] sm:$0xf]
  %v112 = vunpack.c.l.b16 %v60
  %v113 = vunpack.c.l.b16 %v61
  %v114 = vunpack.c.l.b16 %v62
  %v115 = vunpack.c.l.b16 %v63
  %v116 = vunpack.c.l.b16 %v64
  %v117 = vunpack.c.l.b16 %v65
  %v118 = vunpack.c.l.b16 %v66
  %v119 = vunpack.c.l.b16 %v67
  %v120 = vunpack.c.l.b16 %v68
  %v121 = vunpack.c.l.b16 %v69
  %v122 = vunpack.c.l.b16 %v70
  %v123 = vunpack.c.l.b16 %v71
  %v124 = vunpack.c.l.b16 %v72
  %v125 = vunpack.c.l.b16 %v73
  %v126 = vunpack.c.l.b16 %v74
  %v127 = vunpack.c.l.b16 %v75
  %v128 = vunpack.c.l.b16 %v76
  %v129 = vunpack.c.l.b16 %v77
  %v130 = vunpack.c.l.b16 %v78
  %v131 = vunpack.c.l.b16 %v79
  %v132 = vunpack.c.l.b16 %v80
  %v133 = vunpack.c.l.b16 %v81
  %v134 = vpack.c.b16 %v113, %v112
  %v135 = vpack.c.b16 %v115, %v114
  %v136 = vpack.c.b16 %v117, %v116
  %v137 = vpack.c.b16 %v119, %v118
  %v138 = vpack.c.b16 %v121, %v120
  %v139 = vpack.c.b16 %v123, %v122
  %v140 = vpack.c.b16 %v125, %v124
  %v141 = vpack.c.b16 %v127, %v126
  %v142 = vpack.c.b16 %v129, %v128
  %v143 = vpack.c.b16 %v131, %v130
  %v144 = vpack.c.b16 %v133, %v132
  %v153 = vunpack.c.l.b16 %v82
  %v154 = vunpack.c.l.b16 %v83
  %v155 = vunpack.c.l.b16 %v84
  %v156 = vunpack.c.l.b16 %v85
  %v157 = vunpack.c.l.b16 %v86
  %v158 = vunpack.c.l.b16 %v87
  %v159 = vunpack.c.l.b16 %v88
  %v160 = vunpack.c.l.b16 %v89
  %v161 = vpack.c.b16 %v154, %v153
  %v162 = vpack.c.b16 %v156, %v155
  %v163 = vpack.c.b16 %v158, %v157
  %v164 = vpack.c.b16 %v160, %v159
  %vm169 = vcmask 523264
  %v171 = vsel %vm169, %v134, 0
  %v174 = vsel %vm169, %v135, 0
  %v177 = vsel %vm169, %v136, 0
  %v180 = vsel %vm169, %v137, 0
  %v183 = vsel %vm169, %v138, 0
  %v186 = vsel %vm169, %v139, 0
  %v189 = vsel %vm169, %v140, 0
  %v192 = vsel %vm169, %v141, 0
  %v195 = vsel %vm169, %v142, 0
  %v198 = vsel %vm169, %v143, 0
  %v201 = vsel %vm169, %v144, 0
  %203 = vmatprep.subr.bf16.mxu0 0
  %204 = vmatpush1.bf16.msra.mxu0 %v161
  %205 = vmatprep.subr.bf16.mxu0 0
  %206 = vmatpush1.bf16.msra.mxu0 %v162
  %207 = vmatprep.subr.bf16.mxu0 0
  %208 = vmatpush1.bf16.msra.mxu0 %v163
  %209 = vmatprep.subr.bf16.mxu0 0
  %210 = vmatpush1.bf16.msra.mxu0 %v164
  %211 = vmatprep.subr.bf16.mxu0 0
  %212 = vmatpush1.bf16.msra.mxu0 0
  %213 = vmatprep.subr.bf16.mxu0 0
  %214 = vmatpush1.bf16.msra.mxu0 0
  %215 = vmatprep.subr.bf16.mxu0 0
  %216 = vmatpush1.bf16.msra.mxu0 0
  %217 = vmatprep.subr.bf16.mxu0 0
  %218 = vmatpush1.bf16.msra.mxu0 0
  %219 = vmatprep.subr.bf16.mxu0 0
  %220 = vmatpush1.bf16.msra.mxu0 0
  %221 = vmatprep.subr.bf16.mxu0 0
  %222 = vmatpush1.bf16.msra.mxu0 0
  %223 = vmatprep.subr.bf16.mxu0 0
  %224 = vmatpush1.bf16.msra.mxu0 0
  %225 = vmatprep.subr.bf16.mxu0 0
  %226 = vmatpush1.bf16.msra.mxu0 0
  %227 = vmatprep.subr.bf16.mxu0 0
  %228 = vmatpush1.bf16.msra.mxu0 0
  %229 = vmatprep.subr.bf16.mxu0 0
  %230 = vmatpush1.bf16.msra.mxu0 0
  %231 = vmatprep.subr.bf16.mxu0 0
  %232 = vmatpush1.bf16.msra.mxu0 0
  %233 = vmatprep.subr.bf16.mxu0 0
  %234 = vmatpush1.bf16.msra.mxu0 0
  %235 = vmatprep.mubr.bf16.mxu0 0
  %236 = vmatmul.mubr.bf16.gmra.mrb[0].mxu0 %v171
  %v237 = vpop.f32.mrb[0].mxu0
  %v238 = vadd.f32 0.0, %v237
  %v239 = vpop.f32.mrb[0].mxu0
  %v240 = vpop.f32.mrb[0].mxu0
  %v241 = vadd.f32 0.0, %v240
  %v242 = vpop.f32.mrb[0].mxu0
  %243 = vmatprep.mubr.bf16.mxu0 0
  %244 = vmatmul.mubr.bf16.gmra.mrb[0].mxu0 %v174
  %v245 = vpop.f32.mrb[0].mxu0
  %v246 = vadd.f32 0.0, %v245
  %v247 = vpop.f32.mrb[0].mxu0
  %v248 = vpop.f32.mrb[0].mxu0
  %v249 = vadd.f32 0.0, %v248
  %v250 = vpop.f32.mrb[0].mxu0
  %251 = vmatprep.mubr.bf16.mxu0 0
  %252 = vmatmul.mubr.bf16.gmra.mrb[0].mxu0 %v177
  %v253 = vpop.f32.mrb[0].mxu0
  %v254 = vadd.f32 0.0, %v253
  %v255 = vpop.f32.mrb[0].mxu0
  %v256 = vpop.f32.mrb[0].mxu0
  %v257 = vadd.f32 0.0, %v256
  %v258 = vpop.f32.mrb[0].mxu0
  %259 = vmatprep.mubr.bf16.mxu0 0
  %260 = vmatmul.mubr.bf16.gmra.mrb[0].mxu0 %v180
  %v261 = vpop.f32.mrb[0].mxu0
  %v262 = vadd.f32 0.0, %v261
  %v263 = vpop.f32.mrb[0].mxu0
  %v264 = vpop.f32.mrb[0].mxu0
  %v265 = vadd.f32 0.0, %v264
  %v266 = vpop.f32.mrb[0].mxu0
  %267 = vmatprep.mubr.bf16.mxu0 0
  %268 = vmatmul.mubr.bf16.gmra.mrb[0].mxu0 %v183
  %v269 = vpop.f32.mrb[0].mxu0
  %v270 = vadd.f32 0.0, %v269
  %v271 = vpop.f32.mrb[0].mxu0
  %v272 = vpop.f32.mrb[0].mxu0
  %v273 = vadd.f32 0.0, %v272
  %v274 = vpop.f32.mrb[0].mxu0
  %275 = vmatprep.mubr.bf16.mxu0 0
  %276 = vmatmul.mubr.bf16.gmra.mrb[0].mxu0 %v186
  %v277 = vpop.f32.mrb[0].mxu0
  %v278 = vadd.f32 0.0, %v277
  %v279 = vpop.f32.mrb[0].mxu0
  %v280 = vpop.f32.mrb[0].mxu0
  %v281 = vadd.f32 0.0, %v280
  %v282 = vpop.f32.mrb[0].mxu0
  %283 = vmatprep.mubr.bf16.mxu0 0
  %284 = vmatmul.mubr.bf16.gmra.mrb[0].mxu0 %v189
  %v285 = vpop.f32.mrb[0].mxu0
  %v286 = vadd.f32 0.0, %v285
  %v287 = vpop.f32.mrb[0].mxu0
  %v288 = vpop.f32.mrb[0].mxu0
  %v289 = vadd.f32 0.0, %v288
  %v290 = vpop.f32.mrb[0].mxu0
  %291 = vmatprep.mubr.bf16.mxu0 0
  %292 = vmatmul.mubr.bf16.gmra.mrb[0].mxu0 %v192
  %v293 = vpop.f32.mrb[0].mxu0
  %v294 = vadd.f32 0.0, %v293
  %v295 = vpop.f32.mrb[0].mxu0
  %v296 = vpop.f32.mrb[0].mxu0
  %v297 = vadd.f32 0.0, %v296
  %v298 = vpop.f32.mrb[0].mxu0
  %299 = vmatprep.mubr.bf16.mxu0 0
  %300 = vmatmul.mubr.bf16.gmra.mrb[0].mxu0 %v195
  %v301 = vpop.f32.mrb[0].mxu0
  %v302 = vadd.f32 0.0, %v301
  %v303 = vpop.f32.mrb[0].mxu0
  %v304 = vpop.f32.mrb[0].mxu0
  %v305 = vadd.f32 0.0, %v304
  %v306 = vpop.f32.mrb[0].mxu0
  %307 = vmatprep.mubr.bf16.mxu0 0
  %308 = vmatmul.mubr.bf16.gmra.mrb[0].mxu0 %v198
  %v309 = vpop.f32.mrb[0].mxu0
  %v310 = vadd.f32 0.0, %v309
  %v311 = vpop.f32.mrb[0].mxu0
  %v312 = vpop.f32.mrb[0].mxu0
  %v313 = vadd.f32 0.0, %v312
  %v314 = vpop.f32.mrb[0].mxu0
  %315 = vmatprep.mubr.bf16.mxu0 0
  %316 = vmatmul.mubr.bf16.gmra.mrb[0].mxu0 %v201
  %v317 = vpop.f32.mrb[0].mxu0
  %v318 = vadd.f32 0.0, %v317
  %v319 = vpop.f32.mrb[0].mxu0
  %v320 = vpop.f32.mrb[0].mxu0
  %v321 = vadd.f32 0.0, %v320
  %v322 = vpop.f32.mrb[0].mxu0
  %323 = vdwg.mxu0
  %v324 = vadd.f32 %v38, %v238
  %v325 = vadd.f32 %v39, %v241
  %v326 = vadd.f32 %v40, %v246
  %v327 = vadd.f32 %v41, %v249
  %v328 = vadd.f32 %v42, %v254
  %v329 = vadd.f32 %v43, %v257
  %v330 = vadd.f32 %v44, %v262
  %v331 = vadd.f32 %v45, %v265
  %v332 = vadd.f32 %v46, %v270
  %v333 = vadd.f32 %v47, %v273
  %v334 = vadd.f32 %v48, %v278
  %v335 = vadd.f32 %v49, %v281
  %v336 = vadd.f32 %v50, %v286
  %v337 = vadd.f32 %v51, %v289
  %v338 = vadd.f32 %v52, %v294
  %v339 = vadd.f32 %v53, %v297
  %v340 = vadd.f32 %v54, %v302
  %v341 = vadd.f32 %v55, %v305
  %v342 = vadd.f32 %v56, %v310
  %v343 = vadd.f32 %v57, %v313
  %v344 = vadd.f32 %v58, %v318
  %v345 = vadd.f32 %v59, %v321
  %346 = vst [vmem:[#allocation2] sm:$0xff] %v324
  %347 = vst [vmem:[#allocation2 + $0x8] sm:$0xff] %v325
  %348 = vst [vmem:[#allocation2 + $0x10] sm:$0xff] %v326
  %349 = vst [vmem:[#allocation2 + $0x18] sm:$0xff] %v327
  %350 = vst [vmem:[#allocation2 + $0x20] sm:$0xff] %v328
  %351 = vst [vmem:[#allocation2 + $0x28] sm:$0xff] %v329
  %352 = vst [vmem:[#allocation2 + $0x30] sm:$0xff] %v330
  %353 = vst [vmem:[#allocation2 + $0x38] sm:$0xff] %v331
  %354 = vst [vmem:[#allocation2 + $0x40] sm:$0xff] %v332
  %355 = vst [vmem:[#allocation2 + $0x48] sm:$0xff] %v333
  %356 = vst [vmem:[#allocation2 + $0x50] sm:$0xff] %v334
  %357 = vst [vmem:[#allocation2 + $0x58] sm:$0xff] %v335
  %358 = vst [vmem:[#allocation2 + $0x60] sm:$0xff] %v336
  %359 = vst [vmem:[#allocation2 + $0x68] sm:$0xff] %v337
  %360 = vst [vmem:[#allocation2 + $0x70] sm:$0xff] %v338
  %361 = vst [vmem:[#allocation2 + $0x78] sm:$0xff] %v339
  %362 = vst [vmem:[#allocation2 + $0x80] sm:$0xff] %v340
  %363 = vst [vmem:[#allocation2 + $0x88] sm:$0xff] %v341
  %364 = vst [vmem:[#allocation2 + $0x90] sm:$0xff] %v342
  %365 = vst [vmem:[#allocation2 + $0x98] sm:$0xff] %v343
  %366 = vst [vmem:[#allocation2 + $0xa0] sm:$0xff] %v344
  %367 = vst [vmem:[#allocation2 + $0xa8] sm:$0xff] %v345
  // Predicated region
  $region14: #{a_call__.4} parent=0 // pred_check
    %p368 = pneg %p12
  $region15: #{a_call__.4} parent=0 // pred_check_branch
    %370 = sbr.rel (%p368) target = $region17
  $region16: #{a_call__.4} parent=0 // pred_region
    %v371 = vld [vmem:[#allocation2] sm:$0xff]
    %v372 = vld [vmem:[#allocation2 + $0x8] sm:$0xff]
    %v373 = vld [vmem:[#allocation2 + $0x10] sm:$0xff]
    %v374 = vld [vmem:[#allocation2 + $0x18] sm:$0xff]
    %v375 = vld [vmem:[#allocation2 + $0x20] sm:$0xff]
    %v376 = vld [vmem:[#allocation2 + $0x28] sm:$0xff]
    %v377 = vld [vmem:[#allocation2 + $0x30] sm:$0xff]
    %v378 = vld [vmem:[#allocation2 + $0x38] sm:$0xff]
    %v379 = vld [vmem:[#allocation2 + $0x40] sm:$0xff]
    %v380 = vld [vmem:[#allocation2 + $0x48] sm:$0xff]
    %v381 = vld [vmem:[#allocation2 + $0x50] sm:$0xff]
    %v382 = vld [vmem:[#allocation2 + $0x58] sm:$0xff]
    %v383 = vld [vmem:[#allocation2 + $0x60] sm:$0xff]
    %v384 = vld [vmem:[#allocation2 + $0x68] sm:$0xff]
    %v385 = vld [vmem:[#allocation2 + $0x70] sm:$0xff]
    %v386 = vld [vmem:[#allocation2 + $0x78] sm:$0xff]
    %v387 = vld [vmem:[#allocation2 + $0x80] sm:$0xff]
    %v388 = vld [vmem:[#allocation2 + $0x88] sm:$0xff]
    %v389 = vld [vmem:[#allocation2 + $0x90] sm:$0xff]
    %v390 = vld [vmem:[#allocation2 + $0x98] sm:$0xff]
    %v391 = vld [vmem:[#allocation2 + $0xa0] sm:$0xff]
    %v392 = vld [vmem:[#allocation2 + $0xa8] sm:$0xff]
    %393 = vst [vmem:[%s2] sm:$0xff] %v371
    %394 = vst [vmem:[%s2 + $0x8] sm:$0xff] %v372
    %395 = vst [vmem:[%s2 + $0x10] sm:$0xff] %v373
    %396 = vst [vmem:[%s2 + $0x18] sm:$0xff] %v374
    %397 = vst [vmem:[%s2 + $0x20] sm:$0xff] %v375
    %398 = vst [vmem:[%s2 + $0x28] sm:$0xff] %v376
    %399 = vst [vmem:[%s2 + $0x30] sm:$0xff] %v377
    %400 = vst [vmem:[%s2 + $0x38] sm:$0xff] %v378
    %401 = vst [vmem:[%s2 + $0x40] sm:$0xff] %v379
    %402 = vst [vmem:[%s2 + $0x48] sm:$0xff] %v380
    %403 = vst [vmem:[%s2 + $0x50] sm:$0xff] %v381
    %404 = vst [vmem:[%s2 + $0x58] sm:$0xff] %v382
    %405 = vst [vmem:[%s2 + $0x60] sm:$0xff] %v383
    %406 = vst [vmem:[%s2 + $0x68] sm:$0xff] %v384
    %407 = vst [vmem:[%s2 + $0x70] sm:$0xff] %v385
    %408 = vst [vmem:[%s2 + $0x78] sm:$0xff] %v386
    %409 = vst [vmem:[%s2 + $0x80] sm:$0xff] %v387
    %410 = vst [vmem:[%s2 + $0x88] sm:$0xff] %v388
    %411 = vst [vmem:[%s2 + $0x90] sm:$0xff] %v389
    %412 = vst [vmem:[%s2 + $0x98] sm:$0xff] %v390
    %413 = vst [vmem:[%s2 + $0xa0] sm:$0xff] %v391
    %414 = vst [vmem:[%s2 + $0xa8] sm:$0xff] %v392
  $region17: #{a_call__.4} parent=0 // pred_fallthru
    _
  // Predicated region
  $region18: #{a_call__.4} parent=0 // pred_check
    _
  $region19: #{a_call__.4} parent=0 // pred_check_branch
    %416 = sbr.rel (0) target = $region21
  $region20: #{a_call__.4} parent=0 // pred_region
    _
  $region21: #{a_call__.4} parent=0 // pred_fallthru
    _
  // Predicated region
  $region22: #{a_call__.4} parent=0 // pred_check
    _
  $region23: #{a_call__.4} parent=0 // pred_check_branch
    %418 = sbr.rel (0) target = $region25
  $region24: #{a_call__.4} parent=0 // pred_region
    _
  $region25: #{a_call__.4} parent=0 // pred_fallthru
    _

// kernel: a_call__.5
$region0: #{a_call__.5}
  #allocation0 [shape = 'u32[]', space=smem, size = 0x4, offset = 0x4, fixed_abs, tag = 'smem constant byte address 0x4 - core index']
  #allocation1 [shape = 'u32[144,128]{1,0:T(1,128)}', space=vmem, size = 0x12000, scoped, tag = 'internal scratch']
  #allocation2 [shape = 'f32[264,128]{1,0:T(8,128)}', space=vmem, size = 0x21000, scoped, tag = 'scratch operand']
  %s0 = inlined_call_operand.vmem [shape: bf16[528,21], index: 0, kind: input, shape index: {}]
  %s1 = inlined_call_operand.vmem [shape: bf16[21,128], index: 1, kind: input, shape index: {}]
  %s2 = inlined_call_operand.vmem [shape: f32[528,128], index: 2, kind: output, shape index: {}]
  %s3 = sld [smem:[#allocation0]]
  $region49: #{a_call__.5} parent=0
    _
  %s5 = ssub.s32 1, %s3
  %s6 = scalar_select 0, %s5, %s3
  loop: start=0, step=1, limit=4
  $region2: #{a_call__.5} parent=0 // loop_pre_header
    _
  $region3: #{a_call__.5} parent=0 // loop_header
    %s8 = sphi 0, %s12
    %p9 = scmp.ge.s32.totalorder %s8, 4
    %s15 = sphi 0, %s34
    %s16 = sphi 0, %s30
    %s17 = sphi 0, %s26
    %s18 = sphi 0, %s15
    %s19 = sphi 0, %s16
    %s20 = sphi 0, %s17
    %s21 = sphi 0, %s18
    %s22 = sphi 0, %s19
    %s23 = sphi 0, %s20
    %s39 = sphi 0, %s41
    %s42 = sphi 0, %s39
    %s43 = sphi 0, %s42
    %s59 = sphi 0, %s43
    %s67 = sphi 0, %s69
    %s70 = sphi 0, %s67
    %s71 = sphi 0, %s70
    %s87 = sphi 0, %s71
    %s95 = sphi 0, %s97
    %s98 = sphi 0, %s95
    %s99 = sphi 0, %s98
    %s115 = sphi 0, %s99
  $region4: #{a_call__.5} parent=0 // loop_header_branch
    %11 = sbr.rel (%p9) target = $region8
  $region5: #{a_call__.5} parent=0 // loop_body
    %s13 = ssub.s32 %s8, 1
    %s14 = ssub.s32 %s8, 2
    %s24 = sadd.s32 1, %s17
    %p25 = scmp.ge.s32.totalorder %s24, 1
    %s26 = scalar_select %p25, 0, %s24
    %s27 = sadd.s32 1, %s16
    %s28 = scalar_select %p25, %s27, %s16
    %p29 = scmp.ge.s32.totalorder %s28, 1
    %s30 = scalar_select %p29, 0, %s28
    %s31 = sadd.s32 1, %s15
    %s32 = scalar_select %p29, %s31, %s15
    %p33 = scmp.ge.s32.totalorder %s32, 2
    %s34 = scalar_select %p33, 0, %s32
    %s35 = ssub.s32 %s15, %s34
    %s36 = ssub.s32 %s17, %s26
    %s37 = sor.u32 %s35, %s36
    %p38 = scmp.eq.s32.totalorder %s37, 0
    %s40 = sadd.s32 %s39, 1
    %s41 = scalar_select %p38, %s39, %s40
    %p44 = pneg %p38
    %p45 = scmp.eq.s32.totalorder %s8, 1
    %p46 = por %p44, %p45
    %p47 = scmp.ne.s32.totalorder %s39, %s42
    %p48 = scmp.eq.s32.totalorder %s8, 0
    %p49 = por %p47, %p48
    %p50 = scmp.ne.s32.totalorder %s39, %s42
    %p51 = scmp.eq.s32.totalorder %s13, 1
    %p52 = por %p50, %p51
    %p53 = scmp.ne.s32.totalorder %s42, %s43
    %p54 = scmp.eq.s32.totalorder %s13, 0
    %p55 = por %p53, %p54
    %p56 = scmp.ne.s32.totalorder %s42, %s43
    %p57 = scmp.eq.s32.totalorder %s14, 1
    %p58 = por %p56, %p57
    %p60 = scmp.ne.s32.totalorder %s43, %s59
    %p61 = scmp.eq.s32.totalorder %s14, 0
    %p62 = por %p60, %p61
    %s63 = ssub.s32 %s17, %s26
    %s64 = ssub.s32 %s16, %s30
    %s65 = sor.u32 %s63, %s64
    %p66 = scmp.eq.s32.totalorder %s65, 0
    %s68 = sadd.s32 %s67, 1
    %s69 = scalar_select %p66, %s67, %s68
    %p72 = pneg %p66
    %p73 = scmp.eq.s32.totalorder %s8, 1
    %p74 = por %p72, %p73
    %p75 = scmp.ne.s32.totalorder %s67, %s70
    %p76 = scmp.eq.s32.totalorder %s8, 0
    %p77 = por %p75, %p76
    %p78 = scmp.ne.s32.totalorder %s67, %s70
    %p79 = scmp.eq.s32.totalorder %s13, 1
    %p80 = por %p78, %p79
    %p81 = scmp.ne.s32.totalorder %s70, %s71
    %p82 = scmp.eq.s32.totalorder %s13, 0
    %p83 = por %p81, %p82
    %p84 = scmp.ne.s32.totalorder %s70, %s71
    %p85 = scmp.eq.s32.totalorder %s14, 1
    %p86 = por %p84, %p85
    %p88 = scmp.ne.s32.totalorder %s71, %s87
    %p89 = scmp.eq.s32.totalorder %s14, 0
    %p90 = por %p88, %p89
    %s91 = ssub.s32 %s15, %s34
    %s92 = ssub.s32 %s16, %s30
    %s93 = sor.u32 %s91, %s92
    %p94 = scmp.eq.s32.totalorder %s93, 0
    %s96 = sadd.s32 %s95, 1
    %s97 = scalar_select %p94, %s95, %s96
    %p100 = pneg %p94
    %p101 = scmp.eq.s32.totalorder %s8, 1
    %p102 = por %p100, %p101
    %p103 = scmp.ne.s32.totalorder %s95, %s98
    %p104 = scmp.eq.s32.totalorder %s8, 0
    %p105 = por %p103, %p104
    %p106 = scmp.ne.s32.totalorder %s95, %s98
    %p107 = scmp.eq.s32.totalorder %s13, 1
    %p108 = por %p106, %p107
    %p109 = scmp.ne.s32.totalorder %s98, %s99
    %p110 = scmp.eq.s32.totalorder %s13, 0
    %p111 = por %p109, %p110
    %p112 = scmp.ne.s32.totalorder %s98, %s99
    %p113 = scmp.eq.s32.totalorder %s14, 1
    %p114 = por %p112, %p113
    %p116 = scmp.ne.s32.totalorder %s99, %s115
    %p117 = scmp.eq.s32.totalorder %s14, 0
    %p118 = por %p116, %p117
    %p119 = scmp.le.s32.totalorder 1, %s8
    %p120 = scmp.lt.s32.totalorder %s8, 3
    %p121 = pnand %p119, %p120
    %p122 = pneg %p121
    // Predicated region
    $region9: #{a_call__.5} parent=5 // pred_check
      _
    $region10: #{a_call__.5} parent=5 // pred_check_branch
      %124 = sbr.rel (%p121) target = $region12
    $region11: #{a_call__.5} parent=5 // pred_region
      %s125 = ssub.s32 %s8, 1
      // Predicated region
      $region13: #{a_call__.5} parent=11 // pred_check
        %p126 = pneg %p83
      $region14: #{a_call__.5} parent=11 // pred_check_branch
        %128 = sbr.rel (%p126) target = $region16
      $region15: #{a_call__.5} parent=11 // pred_region
        %s129 = smul.u32 3, %s20
        %p130 = scmp.lt.s32.totalorder %s129, 2
        %s131 = scalar_select %p130, %s129, 2
        %p132 = scmp.lt.s32.totalorder %s19, 0
        %s133 = scalar_select %p132, %s19, 0
        %s134 = sadd.s32 %s133, %s131
        %s135 = smul.addr %s134, 4
        %s136 = scalar_lea.vmem %s1, %s135
        %s137 = smul.u32 3, %s20
      $region16: #{a_call__.5} parent=11 // pred_fallthru
        _
    $region12: #{a_call__.5} parent=5 // pred_fallthru
      _
    %p138 = scmp.lt.s32.totalorder %s8, 2
    // Predicated region
    $region17: #{a_call__.5} parent=5 // pred_check
      %p139 = pneg %p138
    $region18: #{a_call__.5} parent=5 // pred_check_branch
      %141 = sbr.rel (%p139) target = $region20
    $region19: #{a_call__.5} parent=5 // pred_region
      // Predicated region
      $region21: #{a_call__.5} parent=19 // pred_check
        %p142 = pneg %p49
      $region22: #{a_call__.5} parent=19 // pred_check_branch
        %144 = sbr.rel (%p142) target = $region24
      $region23: #{a_call__.5} parent=19 // pred_region
        %s145 = smul.u32 33, %s15
        %p146 = scmp.lt.s32.totalorder %s145, 65
        %s147 = scalar_select %p146, %s145, 65
        %p148 = scmp.lt.s32.totalorder %s17, 0
        %s149 = scalar_select %p148, %s17, 0
        %s150 = sadd.s32 %s149, %s147
        %s151 = smul.addr %s150, 4
        %s152 = scalar_lea.vmem %s0, %s151
        %s153 = smul.u32 33, %s15
      $region24: #{a_call__.5} parent=19 // pred_fallthru
        _
    $region20: #{a_call__.5} parent=5 // pred_fallthru
      _
    %p154 = scmp.le.s32.totalorder 1, %s8
    %p155 = scmp.lt.s32.totalorder %s8, 3
    %p156 = pnand %p154, %p155
    %p157 = pneg %p156
    // Predicated region
    $region25: #{a_call__.5} parent=5 // pred_check
      _
    $region26: #{a_call__.5} parent=5 // pred_check_branch
      %159 = sbr.rel (%p156) target = $region28
    $region27: #{a_call__.5} parent=5 // pred_region
      %s160 = ssub.s32 %s8, 1
      %s161 = smul.u32 33, %s18
      %p162 = scmp.lt.s32.totalorder %s161, 65
      %s163 = scalar_select %p162, %s161, 65
      %p164 = scmp.lt.s32.totalorder %s20, 0
      %s165 = scalar_select %p164, %s20, 0
      %s166 = sadd.s32 %s165, %s163
      %s167 = smul.addr %s166, 4
      %s168 = scalar_lea.vmem %s0, %s167
      %p169 = pneg %p55
      %p170 = pneg %p52
      %s171 = smul.u32 3, %s20
      %p172 = scmp.lt.s32.totalorder %s171, 2
      %s173 = scalar_select %p172, %s171, 2
      %p174 = scmp.lt.s32.totalorder %s19, 0
      %s175 = scalar_select %p174, %s19, 0
      %s176 = sadd.s32 %s175, %s173
      %s177 = smul.addr %s176, 4
      %s178 = scalar_lea.vmem %s1, %s177
      %p179 = pneg %p83
      %p180 = pneg %p80
      %p181 = pneg %p111
      %p182 = pneg %p108
      %s183 = smul.u32 33, %s18
      %p184 = scmp.lt.s32.totalorder %s183, 65
      %s185 = scalar_select %p184, %s183, 65
      %p186 = scmp.lt.s32.totalorder %s19, 0
      %s187 = scalar_select %p186, %s19, 0
      %s188 = sadd.s32 %s187, %s185
      %s189 = smul.addr %s188, 8
      %s190 = scalar_lea.vmem %s2, %s189
      %s191 = smul.u32 33, %s18
      %p192 = scmp.lt.s32.totalorder %s191, 65
      %s193 = scalar_select %p192, %s191, 65
      %p194 = scmp.lt.s32.totalorder %s20, 0
      %s195 = scalar_select %p194, %s20, 0
      %s196 = sadd.s32 %s195, %s193
      %s197 = smul.addr %s196, 4
      %s198 = scalar_lea.vmem %s0, %s197
      %s199 = smul.u32 33, %s18
      %s200 = smul.u32 3, %s20
      %p201 = scmp.lt.s32.totalorder %s200, 2
      %s202 = scalar_select %p201, %s200, 2
      %p203 = scmp.lt.s32.totalorder %s19, 0
      %s204 = scalar_select %p203, %s19, 0
      %s205 = sadd.s32 %s204, %s202
      %s206 = smul.addr %s205, 4
      %s207 = scalar_lea.vmem %s1, %s206
      %s208 = smul.u32 3, %s20
      %s209 = smul.u32 33, %s18
      %p210 = scmp.lt.s32.totalorder %s209, 65
      %s211 = scalar_select %p210, %s209, 65
      %p212 = scmp.lt.s32.totalorder %s19, 0
      %s213 = scalar_select %p212, %s19, 0
      %s214 = sadd.s32 %s213, %s211
      %s215 = smul.addr %s214, 8
      %s216 = scalar_lea.vmem %s2, %s215
      %s217 = smul.u32 33, %s18
      %p219 = scmp.eq.s32.totalorder %s20, 0
      // Predicated region
      $region29: #{a_call__.5} parent=27 // pred_check
        %p220 = pneg %p219
      $region30: #{a_call__.5} parent=27 // pred_check_branch
        %222 = sbr.rel (%p220) target = $region32
      $region31: #{a_call__.5} parent=27 // pred_region
        %223 = vst [vmem:[#allocation2] sm:$0xff] 0.0
        %224 = vst [vmem:[#allocation2 + $0x8] sm:$0xff] 0.0
        %225 = vst [vmem:[#allocation2 + $0x10] sm:$0xff] 0.0
        %226 = vst [vmem:[#allocation2 + $0x18] sm:$0xff] 0.0
        %227 = vst [vmem:[#allocation2 + $0x20] sm:$0xff] 0.0
        %228 = vst [vmem:[#allocation2 + $0x28] sm:$0xff] 0.0
        %229 = vst [vmem:[#allocation2 + $0x30] sm:$0xff] 0.0
        %230 = vst [vmem:[#allocation2 + $0x38] sm:$0xff] 0.0
        %231 = vst [vmem:[#allocation2 + $0x40] sm:$0xff] 0.0
        %232 = vst [vmem:[#allocation2 + $0x48] sm:$0xff] 0.0
        %233 = vst [vmem:[#allocation2 + $0x50] sm:$0xff] 0.0
        %234 = vst [vmem:[#allocation2 + $0x58] sm:$0xff] 0.0
        %235 = vst [vmem:[#allocation2 + $0x60] sm:$0xff] 0.0
        %236 = vst [vmem:[#allocation2 + $0x68] sm:$0xff] 0.0
        %237 = vst [vmem:[#allocation2 + $0x70] sm:$0xff] 0.0
        %238 = vst [vmem:[#allocation2 + $0x78] sm:$0xff] 0.0
        %239 = vst [vmem:[#allocation2 + $0x80] sm:$0xff] 0.0
        %240 = vst [vmem:[#allocation2 + $0x88] sm:$0xff] 0.0
        %241 = vst [vmem:[#allocation2 + $0x90] sm:$0xff] 0.0
        %242 = vst [vmem:[#allocation2 + $0x98] sm:$0xff] 0.0
        %243 = vst [vmem:[#allocation2 + $0xa0] sm:$0xff] 0.0
        %244 = vst [vmem:[#allocation2 + $0xa8] sm:$0xff] 0.0
        %245 = vst [vmem:[#allocation2 + $0xb0] sm:$0xff] 0.0
        %246 = vst [vmem:[#allocation2 + $0xb8] sm:$0xff] 0.0
        %247 = vst [vmem:[#allocation2 + $0xc0] sm:$0xff] 0.0
        %248 = vst [vmem:[#allocation2 + $0xc8] sm:$0xff] 0.0
        %249 = vst [vmem:[#allocation2 + $0xd0] sm:$0xff] 0.0
        %250 = vst [vmem:[#allocation2 + $0xd8] sm:$0xff] 0.0
        %251 = vst [vmem:[#allocation2 + $0xe0] sm:$0xff] 0.0
        %252 = vst [vmem:[#allocation2 + $0xe8] sm:$0xff] 0.0
        %253 = vst [vmem:[#allocation2 + $0xf0] sm:$0xff] 0.0
        %254 = vst [vmem:[#allocation2 + $0xf8] sm:$0xff] 0.0
        %255 = vst [vmem:[#allocation2 + $0x100] sm:$0xff] 0.0
      $region32: #{a_call__.5} parent=27 // pred_fallthru
        _
      %v256 = vld [vmem:[#allocation2] sm:$0xff]
      %v257 = vld [vmem:[#allocation2 + $0x8] sm:$0xff]
      %v258 = vld [vmem:[#allocation2 + $0x10] sm:$0xff]
      %v259 = vld [vmem:[#allocation2 + $0x18] sm:$0xff]
      %v260 = vld [vmem:[#allocation2 + $0x20] sm:$0xff]
      %v261 = vld [vmem:[#allocation2 + $0x28] sm:$0xff]
      %v262 = vld [vmem:[#allocation2 + $0x30] sm:$0xff]
      %v263 = vld [vmem:[#allocation2 + $0x38] sm:$0xff]
      %v264 = vld [vmem:[#allocation2 + $0x40] sm:$0xff]
      %v265 = vld [vmem:[#allocation2 + $0x48] sm:$0xff]
      %v266 = vld [vmem:[#allocation2 + $0x50] sm:$0xff]
      %v267 = vld [vmem:[#allocation2 + $0x58] sm:$0xff]
      %v268 = vld [vmem:[#allocation2 + $0x60] sm:$0xff]
      %v269 = vld [vmem:[#allocation2 + $0x68] sm:$0xff]
      %v270 = vld [vmem:[#allocation2 + $0x70] sm:$0xff]
      %v271 = vld [vmem:[#allocation2 + $0x78] sm:$0xff]
      %v272 = vld [vmem:[#allocation2 + $0x80] sm:$0xff]
      %v273 = vld [vmem:[#allocation2 + $0x88] sm:$0xff]
      %v274 = vld [vmem:[#allocation2 + $0x90] sm:$0xff]
      %v275 = vld [vmem:[#allocation2 + $0x98] sm:$0xff]
      %v276 = vld [vmem:[#allocation2 + $0xa0] sm:$0xff]
      %v277 = vld [vmem:[#allocation2 + $0xa8] sm:$0xff]
      %v278 = vld [vmem:[#allocation2 + $0xb0] sm:$0xff]
      %v279 = vld [vmem:[#allocation2 + $0xb8] sm:$0xff]
      %v280 = vld [vmem:[#allocation2 + $0xc0] sm:$0xff]
      %v281 = vld [vmem:[#allocation2 + $0xc8] sm:$0xff]
      %v282 = vld [vmem:[#allocation2 + $0xd0] sm:$0xff]
      %v283 = vld [vmem:[#allocation2 + $0xd8] sm:$0xff]
      %v284 = vld [vmem:[#allocation2 + $0xe0] sm:$0xff]
      %v285 = vld [vmem:[#allocation2 + $0xe8] sm:$0xff]
      %v286 = vld [vmem:[#allocation2 + $0xf0] sm:$0xff]
      %v287 = vld [vmem:[#allocation2 + $0xf8] sm:$0xff]
      %v288 = vld [vmem:[#allocation2 + $0x100] sm:$0xff]
      %v289 = vld [vmem:[%s198] sm:$0xf]
      %v290 = vld [vmem:[%s198 + $0x4] sm:$0xf]
      %v291 = vld [vmem:[%s198 + $0x8] sm:$0xf]
      %v292 = vld [vmem:[%s198 + $0xc] sm:$0xf]
      %v293 = vld [vmem:[%s198 + $0x10] sm:$0xf]
      %v294 = vld [vmem:[%s198 + $0x14] sm:$0xf]
      %v295 = vld [vmem:[%s198 + $0x18] sm:$0xf]
      %v296 = vld [vmem:[%s198 + $0x1c] sm:$0xf]
      %v297 = vld [vmem:[%s198 + $0x20] sm:$0xf]
      %v298 = vld [vmem:[%s198 + $0x24] sm:$0xf]
      %v299 = vld [vmem:[%s198 + $0x28] sm:$0xf]
      %v300 = vld [vmem:[%s198 + $0x2c] sm:$0xf]
      %v301 = vld [vmem:[%s198 + $0x30] sm:$0xf]
      %v302 = vld [vmem:[%s198 + $0x34] sm:$0xf]
      %v303 = vld [vmem:[%s198 + $0x38] sm:$0xf]
      %v304 = vld [vmem:[%s198 + $0x3c] sm:$0xf]
      %v305 = vld [vmem:[%s198 + $0x40] sm:$0xf]
      %v306 = vld [vmem:[%s198 + $0x44] sm:$0xf]
      %v307 = vld [vmem:[%s198 + $0x48] sm:$0xf]
      %v308 = vld [vmem:[%s198 + $0x4c] sm:$0xf]
      %v309 = vld [vmem:[%s198 + $0x50] sm:$0xf]
      %v310 = vld [vmem:[%s198 + $0x54] sm:$0xf]
      %v311 = vld [vmem:[%s198 + $0x58] sm:$0xf]
      %v312 = vld [vmem:[%s198 + $0x5c] sm:$0xf]
      %v313 = vld [vmem:[%s198 + $0x60] sm:$0xf]
      %v314 = vld [vmem:[%s198 + $0x64] sm:$0xf]
      %v315 = vld [vmem:[%s198 + $0x68] sm:$0xf]
      %v316 = vld [vmem:[%s198 + $0x6c] sm:$0xf]
      %v317 = vld [vmem:[%s198 + $0x70] sm:$0xf]
      %v318 = vld [vmem:[%s198 + $0x74] sm:$0xf]
      %v319 = vld [vmem:[%s198 + $0x78] sm:$0xf]
      %v320 = vld [vmem:[%s198 + $0x7c] sm:$0xf]
      %v321 = vld [vmem:[%s198 + $0x80] sm:$0xf]
      %v322 = vld [vmem:[%s207] sm:$0xf]
      %v323 = vld [vmem:[%s207 + $0x4] sm:$0xf]
      %v324 = vld [vmem:[%s207 + $0x8] sm:$0x7]
      %v358 = vunpack.c.l.b16 %v289
      %v359 = vunpack.c.l.b16 %v290
      %v360 = vunpack.c.l.b16 %v291
      %v361 = vunpack.c.l.b16 %v292
      %v362 = vunpack.c.l.b16 %v293
      %v363 = vunpack.c.l.b16 %v294
      %v364 = vunpack.c.l.b16 %v295
      %v365 = vunpack.c.l.b16 %v296
      %v366 = vunpack.c.l.b16 %v297
      %v367 = vunpack.c.l.b16 %v298
      %v368 = vunpack.c.l.b16 %v299
      %v369 = vunpack.c.l.b16 %v300
      %v370 = vunpack.c.l.b16 %v301
      %v371 = vunpack.c.l.b16 %v302
      %v372 = vunpack.c.l.b16 %v303
      %v373 = vunpack.c.l.b16 %v304
      %v374 = vunpack.c.l.b16 %v305
      %v375 = vunpack.c.l.b16 %v306
      %v376 = vunpack.c.l.b16 %v307
      %v377 = vunpack.c.l.b16 %v308
      %v378 = vunpack.c.l.b16 %v309
      %v379 = vunpack.c.l.b16 %v310
      %v380 = vunpack.c.l.b16 %v311
      %v381 = vunpack.c.l.b16 %v312
      %v382 = vunpack.c.l.b16 %v313
      %v383 = vunpack.c.l.b16 %v314
      %v384 = vunpack.c.l.b16 %v315
      %v385 = vunpack.c.l.b16 %v316
      %v386 = vunpack.c.l.b16 %v317
      %v387 = vunpack.c.l.b16 %v318
      %v388 = vunpack.c.l.b16 %v319
      %v389 = vunpack.c.l.b16 %v320
      %v390 = vunpack.c.l.b16 %v321
      %v391 = vpack.c.b16 %v359, %v358
      %v392 = vpack.c.b16 %v361, %v360
      %v393 = vpack.c.b16 %v363, %v362
      %v394 = vpack.c.b16 %v365, %v364
      %v395 = vpack.c.b16 %v367, %v366
      %v396 = vpack.c.b16 %v369, %v368
      %v397 = vpack.c.b16 %v371, %v370
      %v398 = vpack.c.b16 %v373, %v372
      %v399 = vpack.c.b16 %v375, %v374
      %v400 = vpack.c.b16 %v377, %v376
      %v401 = vpack.c.b16 %v379, %v378
      %v402 = vpack.c.b16 %v381, %v380
      %v403 = vpack.c.b16 %v383, %v382
      %v404 = vpack.c.b16 %v385, %v384
      %v405 = vpack.c.b16 %v387, %v386
      %v406 = vpack.c.b16 %v389, %v388
      %v407 = vpack.c.b16 %v390, %v390
      %v411 = vunpack.c.l.b16 %v322
      %v412 = vunpack.c.l.b16 %v323
      %v413 = vunpack.c.l.b16 %v324
      %v414 = vpack.c.b16 %v412, %v411
      %v415 = vpack.c.b16 %v413, %v413
      %vm417 = vcmask 171008
      %v419 = vsel %vm417, %v391, 0
      %v422 = vsel %vm417, %v392, 0
      %v425 = vsel %vm417, %v393, 0
      %v428 = vsel %vm417, %v394, 0
      %v431 = vsel %vm417, %v395, 0
      %v434 = vsel %vm417, %v396, 0
      %v437 = vsel %vm417, %v397, 0
      %v440 = vsel %vm417, %v398, 0
      %v443 = vsel %vm417, %v399, 0
      %v446 = vsel %vm417, %v400, 0
      %v449 = vsel %vm417, %v401, 0
      %v452 = vsel %vm417, %v402, 0
      %v455 = vsel %vm417, %v403, 0
      %v458 = vsel %vm417, %v404, 0
      %v461 = vsel %vm417, %v405, 0
      %v464 = vsel %vm417, %v406, 0
      %v467 = vsel %vm417, %v407, 0
      %vm469 = vcmask 1041408
      %vm470 = vcmask 1042432
      %v471 = vsel %vm469, 4294967295, 65535
      %v472 = vsel %vm470, %v471, 0
      %v474 = vand.u32 %v415, %v472
      %476 = vmatprep.subr.bf16.mxu0 0
      %477 = vmatpush1.bf16.msra.mxu0 %v414
      %478 = vmatprep.subr.bf16.mxu0 0
      %479 = vmatpush1.bf16.msra.mxu0 %v474
      %480 = vmatprep.subr.bf16.mxu0 0
      %481 = vmatpush1.bf16.msra.mxu0 0
      %482 = vmatprep.subr.bf16.mxu0 0
      %483 = vmatpush1.bf16.msra.mxu0 0
      %484 = vmatprep.subr.bf16.mxu0 0
      %485 = vmatpush1.bf16.msra.mxu0 0
      %486 = vmatprep.subr.bf16.mxu0 0
      %487 = vmatpush1.bf16.msra.mxu0 0
      %488 = vmatprep.subr.bf16.mxu0 0
      %489 = vmatpush1.bf16.msra.mxu0 0
      %490 = vmatprep.subr.bf16.mxu0 0
      %491 = vmatpush1.bf16.msra.mxu0 0
      %492 = vmatprep.subr.bf16.mxu0 0
      %493 = vmatpush1.bf16.msra.mxu0 0
      %494 = vmatprep.subr.bf16.mxu0 0
      %495 = vmatpush1.bf16.msra.mxu0 0
      %496 = vmatprep.subr.bf16.mxu0 0
      %497 = vmatpush1.bf16.msra.mxu0 0
      %498 = vmatprep.subr.bf16.mxu0 0
      %499 = vmatpush1.bf16.msra.mxu0 0
      %500 = vmatprep.subr.bf16.mxu0 0
      %501 = vmatpush1.bf16.msra.mxu0 0
      %502 = vmatprep.subr.bf16.mxu0 0
      %503 = vmatpush1.bf16.msra.mxu0 0
      %504 = vmatprep.subr.bf16.mxu0 0
      %505 = vmatpush1.bf16.msra.mxu0 0
      %506 = vmatprep.subr.bf16.mxu0 0
      %507 = vmatpush1.bf16.msra.mxu0 0
      %508 = vmatprep.mubr.bf16.mxu0 0
      %509 = vmatmul.mubr.bf16.gmra.mrb[0].mxu0 %v419
      %v510 = vpop.f32.mrb[0].mxu0
      %v511 = vadd.f32 0.0, %v510
      %v512 = vpop.f32.mrb[0].mxu0
      %v513 = vpop.f32.mrb[0].mxu0
      %v514 = vadd.f32 0.0, %v513
      %v515 = vpop.f32.mrb[0].mxu0
      %516 = vmatprep.mubr.bf16.mxu0 0
      %517 = vmatmul.mubr.bf16.gmra.mrb[0].mxu0 %v422
      %v518 = vpop.f32.mrb[0].mxu0
      %v519 = vadd.f32 0.0, %v518
      %v520 = vpop.f32.mrb[0].mxu0
      %v521 = vpop.f32.mrb[0].mxu0
      %v522 = vadd.f32 0.0, %v521
      %v523 = vpop.f32.mrb[0].mxu0
      %524 = vmatprep.mubr.bf16.mxu0 0
      %525 = vmatmul.mubr.bf16.gmra.mrb[0].mxu0 %v425
      %v526 = vpop.f32.mrb[0].mxu0
      %v527 = vadd.f32 0.0, %v526
      %v528 = vpop.f32.mrb[0].mxu0
      %v529 = vpop.f32.mrb[0].mxu0
      %v530 = vadd.f32 0.0, %v529
      %v531 = vpop.f32.mrb[0].mxu0
      %532 = vmatprep.mubr.bf16.mxu0 0
      %533 = vmatmul.mubr.bf16.gmra.mrb[0].mxu0 %v428
      %v534 = vpop.f32.mrb[0].mxu0
      %v535 = vadd.f32 0.0, %v534
      %v536 = vpop.f32.mrb[0].mxu0
      %v537 = vpop.f32.mrb[0].mxu0
      %v538 = vadd.f32 0.0, %v537
      %v539 = vpop.f32.mrb[0].mxu0
      %540 = vmatprep.mubr.bf16.mxu0 0
      %541 = vmatmul.mubr.bf16.gmra.mrb[0].mxu0 %v431
      %v542 = vpop.f32.mrb[0].mxu0
      %v543 = vadd.f32 0.0, %v542
      %v544 = vpop.f32.mrb[0].mxu0
      %v545 = vpop.f32.mrb[0].mxu0
      %v546 = vadd.f32 0.0, %v545
      %v547 = vpop.f32.mrb[0].mxu0
      %548 = vmatprep.mubr.bf16.mxu0 0
      %549 = vmatmul.mubr.bf16.gmra.mrb[0].mxu0 %v434
      %v550 = vpop.f32.mrb[0].mxu0
      %v551 = vadd.f32 0.0, %v550
      %v552 = vpop.f32.mrb[0].mxu0
      %v553 = vpop.f32.mrb[0].mxu0
      %v554 = vadd.f32 0.0, %v553
      %v555 = vpop.f32.mrb[0].mxu0
      %556 = vmatprep.mubr.bf16.mxu0 0
      %557 = vmatmul.mubr.bf16.gmra.mrb[0].mxu0 %v437
      %v558 = vpop.f32.mrb[0].mxu0
      %v559 = vadd.f32 0.0, %v558
      %v560 = vpop.f32.mrb[0].mxu0
      %v561 = vpop.f32.mrb[0].mxu0
      %v562 = vadd.f32 0.0, %v561
      %v563 = vpop.f32.mrb[0].mxu0
      %564 = vmatprep.mubr.bf16.mxu0 0
      %565 = vmatmul.mubr.bf16.gmra.mrb[0].mxu0 %v440
      %v566 = vpop.f32.mrb[0].mxu0
      %v567 = vadd.f32 0.0, %v566
      %v568 = vpop.f32.mrb[0].mxu0
      %v569 = vpop.f32.mrb[0].mxu0
      %v570 = vadd.f32 0.0, %v569
      %v571 = vpop.f32.mrb[0].mxu0
      %572 = vmatprep.mubr.bf16.mxu0 0
      %573 = vmatmul.mubr.bf16.gmra.mrb[0].mxu0 %v443
      %v574 = vpop.f32.mrb[0].mxu0
      %v575 = vadd.f32 0.0, %v574
      %v576 = vpop.f32.mrb[0].mxu0
      %v577 = vpop.f32.mrb[0].mxu0
      %v578 = vadd.f32 0.0, %v577
      %v579 = vpop.f32.mrb[0].mxu0
      %580 = vmatprep.mubr.bf16.mxu0 0
      %581 = vmatmul.mubr.bf16.gmra.mrb[0].mxu0 %v446
      %v582 = vpop.f32.mrb[0].mxu0
      %v583 = vadd.f32 0.0, %v582
      %v584 = vpop.f32.mrb[0].mxu0
      %v585 = vpop.f32.mrb[0].mxu0
      %v586 = vadd.f32 0.0, %v585
      %v587 = vpop.f32.mrb[0].mxu0
      %588 = vmatprep.mubr.bf16.mxu0 0
      %589 = vmatmul.mubr.bf16.gmra.mrb[0].mxu0 %v449
      %v590 = vpop.f32.mrb[0].mxu0
      %v591 = vadd.f32 0.0, %v590
      %v592 = vpop.f32.mrb[0].mxu0
      %v593 = vpop.f32.mrb[0].mxu0
      %v594 = vadd.f32 0.0, %v593
      %v595 = vpop.f32.mrb[0].mxu0
      %596 = vmatprep.mubr.bf16.mxu0 0
      %597 = vmatmul.mubr.bf16.gmra.mrb[0].mxu0 %v452
      %v598 = vpop.f32.mrb[0].mxu0
      %v599 = vadd.f32 0.0, %v598
      %v600 = vpop.f32.mrb[0].mxu0
      %v601 = vpop.f32.mrb[0].mxu0
      %v602 = vadd.f32 0.0, %v601
      %v603 = vpop.f32.mrb[0].mxu0
      %604 = vmatprep.mubr.bf16.mxu0 0
      %605 = vmatmul.mubr.bf16.gmra.mrb[0].mxu0 %v455
      %v606 = vpop.f32.mrb[0].mxu0
      %v607 = vadd.f32 0.0, %v606
      %v608 = vpop.f32.mrb[0].mxu0
      %v609 = vpop.f32.mrb[0].mxu0
      %v610 = vadd.f32 0.0, %v609
      %v611 = vpop.f32.mrb[0].mxu0
      %612 = vmatprep.mubr.bf16.mxu0 0
      %613 = vmatmul.mubr.bf16.gmra.mrb[0].mxu0 %v458
      %v614 = vpop.f32.mrb[0].mxu0
      %v615 = vadd.f32 0.0, %v614
      %v616 = vpop.f32.mrb[0].mxu0
      %v617 = vpop.f32.mrb[0].mxu0
      %v618 = vadd.f32 0.0, %v617
      %v619 = vpop.f32.mrb[0].mxu0
      %620 = vmatprep.mubr.bf16.mxu0 0
      %621 = vmatmul.mubr.bf16.gmra.mrb[0].mxu0 %v461
      %v622 = vpop.f32.mrb[0].mxu0
      %v623 = vadd.f32 0.0, %v622
      %v624 = vpop.f32.mrb[0].mxu0
      %v625 = vpop.f32.mrb[0].mxu0
      %v626 = vadd.f32 0.0, %v625
      %v627 = vpop.f32.mrb[0].mxu0
      %628 = vmatprep.mubr.bf16.mxu0 0
      %629 = vmatmul.mubr.bf16.gmra.mrb[0].mxu0 %v464
      %v630 = vpop.f32.mrb[0].mxu0
      %v631 = vadd.f32 0.0, %v630
      %v632 = vpop.f32.mrb[0].mxu0
      %v633 = vpop.f32.mrb[0].mxu0
      %v634 = vadd.f32 0.0, %v633
      %v635 = vpop.f32.mrb[0].mxu0
      %636 = vmatprep.mubr.bf16.mxu0 0
      %637 = vmatmul.mubr.bf16.gmra.mrb[0].mxu0 %v467
      %v638 = vpop.f32.mrb[0].mxu0
      %v639 = vadd.f32 0.0, %v638
      %v640 = vpop.f32.mrb[0].mxu0
      %v641 = vpop.f32.mrb[0].mxu0
      %v642 = vpop.f32.mrb[0].mxu0
      %643 = vdwg.mxu0
      %v644 = vadd.f32 %v256, %v511
      %v645 = vadd.f32 %v257, %v514
      %v646 = vadd.f32 %v258, %v519
      %v647 = vadd.f32 %v259, %v522
      %v648 = vadd.f32 %v260, %v527
      %v649 = vadd.f32 %v261, %v530
      %v650 = vadd.f32 %v262, %v535
      %v651 = vadd.f32 %v263, %v538
      %v652 = vadd.f32 %v264, %v543
      %v653 = vadd.f32 %v265, %v546
      %v654 = vadd.f32 %v266, %v551
      %v655 = vadd.f32 %v267, %v554
      %v656 = vadd.f32 %v268, %v559
      %v657 = vadd.f32 %v269, %v562
      %v658 = vadd.f32 %v270, %v567
      %v659 = vadd.f32 %v271, %v570
      %v660 = vadd.f32 %v272, %v575
      %v661 = vadd.f32 %v273, %v578
      %v662 = vadd.f32 %v274, %v583
      %v663 = vadd.f32 %v275, %v586
      %v664 = vadd.f32 %v276, %v591
      %v665 = vadd.f32 %v277, %v594
      %v666 = vadd.f32 %v278, %v599
      %v667 = vadd.f32 %v279, %v602
      %v668 = vadd.f32 %v280, %v607
      %v669 = vadd.f32 %v281, %v610
      %v670 = vadd.f32 %v282, %v615
      %v671 = vadd.f32 %v283, %v618
      %v672 = vadd.f32 %v284, %v623
      %v673 = vadd.f32 %v285, %v626
      %v674 = vadd.f32 %v286, %v631
      %v675 = vadd.f32 %v287, %v634
      %v676 = vadd.f32 %v288, %v639
      %677 = vst [vmem:[#allocation2] sm:$0xff] %v644
      %678 = vst [vmem:[#allocation2 + $0x8] sm:$0xff] %v645
      %679 = vst [vmem:[#allocation2 + $0x10] sm:$0xff] %v646
      %680 = vst [vmem:[#allocation2 + $0x18] sm:$0xff] %v647
      %681 = vst [vmem:[#allocation2 + $0x20] sm:$0xff] %v648
      %682 = vst [vmem:[#allocation2 + $0x28] sm:$0xff] %v649
      %683 = vst [vmem:[#allocation2 + $0x30] sm:$0xff] %v650
      %684 = vst [vmem:[#allocation2 + $0x38] sm:$0xff] %v651
      %685 = vst [vmem:[#allocation2 + $0x40] sm:$0xff] %v652
      %686 = vst [vmem:[#allocation2 + $0x48] sm:$0xff] %v653
      %687 = vst [vmem:[#allocation2 + $0x50] sm:$0xff] %v654
      %688 = vst [vmem:[#allocation2 + $0x58] sm:$0xff] %v655
      %689 = vst [vmem:[#allocation2 + $0x60] sm:$0xff] %v656
      %690 = vst [vmem:[#allocation2 + $0x68] sm:$0xff] %v657
      %691 = vst [vmem:[#allocation2 + $0x70] sm:$0xff] %v658
      %692 = vst [vmem:[#allocation2 + $0x78] sm:$0xff] %v659
      %693 = vst [vmem:[#allocation2 + $0x80] sm:$0xff] %v660
      %694 = vst [vmem:[#allocation2 + $0x88] sm:$0xff] %v661
      %695 = vst [vmem:[#allocation2 + $0x90] sm:$0xff] %v662
      %696 = vst [vmem:[#allocation2 + $0x98] sm:$0xff] %v663
      %697 = vst [vmem:[#allocation2 + $0xa0] sm:$0xff] %v664
      %698 = vst [vmem:[#allocation2 + $0xa8] sm:$0xff] %v665
      %699 = vst [vmem:[#allocation2 + $0xb0] sm:$0xff] %v666
      %700 = vst [vmem:[#allocation2 + $0xb8] sm:$0xff] %v667
      %701 = vst [vmem:[#allocation2 + $0xc0] sm:$0xff] %v668
      %702 = vst [vmem:[#allocation2 + $0xc8] sm:$0xff] %v669
      %703 = vst [vmem:[#allocation2 + $0xd0] sm:$0xff] %v670
      %704 = vst [vmem:[#allocation2 + $0xd8] sm:$0xff] %v671
      %705 = vst [vmem:[#allocation2 + $0xe0] sm:$0xff] %v672
      %706 = vst [vmem:[#allocation2 + $0xe8] sm:$0xff] %v673
      %707 = vst [vmem:[#allocation2 + $0xf0] sm:$0xff] %v674
      %708 = vst [vmem:[#allocation2 + $0xf8] sm:$0xff] %v675
      %709 = vst [vmem:[#allocation2 + $0x100] sm:$0xff] %v676
      // Predicated region
      $region33: #{a_call__.5} parent=27 // pred_check
        %p710 = pneg %p219
      $region34: #{a_call__.5} parent=27 // pred_check_branch
        %712 = sbr.rel (%p710) target = $region36
      $region35: #{a_call__.5} parent=27 // pred_region
        %v713 = vld [vmem:[#allocation2] sm:$0xff]
        %v714 = vld [vmem:[#allocation2 + $0x8] sm:$0xff]
        %v715 = vld [vmem:[#allocation2 + $0x10] sm:$0xff]
        %v716 = vld [vmem:[#allocation2 + $0x18] sm:$0xff]
        %v717 = vld [vmem:[#allocation2 + $0x20] sm:$0xff]
        %v718 = vld [vmem:[#allocation2 + $0x28] sm:$0xff]
        %v719 = vld [vmem:[#allocation2 + $0x30] sm:$0xff]
        %v720 = vld [vmem:[#allocation2 + $0x38] sm:$0xff]
        %v721 = vld [vmem:[#allocation2 + $0x40] sm:$0xff]
        %v722 = vld [vmem:[#allocation2 + $0x48] sm:$0xff]
        %v723 = vld [vmem:[#allocation2 + $0x50] sm:$0xff]
        %v724 = vld [vmem:[#allocation2 + $0x58] sm:$0xff]
        %v725 = vld [vmem:[#allocation2 + $0x60] sm:$0xff]
        %v726 = vld [vmem:[#allocation2 + $0x68] sm:$0xff]
        %v727 = vld [vmem:[#allocation2 + $0x70] sm:$0xff]
        %v728 = vld [vmem:[#allocation2 + $0x78] sm:$0xff]
        %v729 = vld [vmem:[#allocation2 + $0x80] sm:$0xff]
        %v730 = vld [vmem:[#allocation2 + $0x88] sm:$0xff]
        %v731 = vld [vmem:[#allocation2 + $0x90] sm:$0xff]
        %v732 = vld [vmem:[#allocation2 + $0x98] sm:$0xff]
        %v733 = vld [vmem:[#allocation2 + $0xa0] sm:$0xff]
        %v734 = vld [vmem:[#allocation2 + $0xa8] sm:$0xff]
        %v735 = vld [vmem:[#allocation2 + $0xb0] sm:$0xff]
        %v736 = vld [vmem:[#allocation2 + $0xb8] sm:$0xff]
        %v737 = vld [vmem:[#allocation2 + $0xc0] sm:$0xff]
        %v738 = vld [vmem:[#allocation2 + $0xc8] sm:$0xff]
        %v739 = vld [vmem:[#allocation2 + $0xd0] sm:$0xff]
        %v740 = vld [vmem:[#allocation2 + $0xd8] sm:$0xff]
        %v741 = vld [vmem:[#allocation2 + $0xe0] sm:$0xff]
        %v742 = vld [vmem:[#allocation2 + $0xe8] sm:$0xff]
        %v743 = vld [vmem:[#allocation2 + $0xf0] sm:$0xff]
        %v744 = vld [vmem:[#allocation2 + $0xf8] sm:$0xff]
        %v745 = vld [vmem:[#allocation2 + $0x100] sm:$0xff]
        %746 = vst [vmem:[%s216] sm:$0xff] %v713
        %747 = vst [vmem:[%s216 + $0x8] sm:$0xff] %v714
        %748 = vst [vmem:[%s216 + $0x10] sm:$0xff] %v715
        %749 = vst [vmem:[%s216 + $0x18] sm:$0xff] %v716
        %750 = vst [vmem:[%s216 + $0x20] sm:$0xff] %v717
        %751 = vst [vmem:[%s216 + $0x28] sm:$0xff] %v718
        %752 = vst [vmem:[%s216 + $0x30] sm:$0xff] %v719
        %753 = vst [vmem:[%s216 + $0x38] sm:$0xff] %v720
        %754 = vst [vmem:[%s216 + $0x40] sm:$0xff] %v721
        %755 = vst [vmem:[%s216 + $0x48] sm:$0xff] %v722
        %756 = vst [vmem:[%s216 + $0x50] sm:$0xff] %v723
        %757 = vst [vmem:[%s216 + $0x58] sm:$0xff] %v724
        %758 = vst [vmem:[%s216 + $0x60] sm:$0xff] %v725
        %759 = vst [vmem:[%s216 + $0x68] sm:$0xff] %v726
        %760 = vst [vmem:[%s216 + $0x70] sm:$0xff] %v727
        %761 = vst [vmem:[%s216 + $0x78] sm:$0xff] %v728
        %762 = vst [vmem:[%s216 + $0x80] sm:$0xff] %v729
        %763 = vst [vmem:[%s216 + $0x88] sm:$0xff] %v730
        %764 = vst [vmem:[%s216 + $0x90] sm:$0xff] %v731
        %765 = vst [vmem:[%s216 + $0x98] sm:$0xff] %v732
        %766 = vst [vmem:[%s216 + $0xa0] sm:$0xff] %v733
        %767 = vst [vmem:[%s216 + $0xa8] sm:$0xff] %v734
        %768 = vst [vmem:[%s216 + $0xb0] sm:$0xff] %v735
        %769 = vst [vmem:[%s216 + $0xb8] sm:$0xff] %v736
        %770 = vst [vmem:[%s216 + $0xc0] sm:$0xff] %v737
        %771 = vst [vmem:[%s216 + $0xc8] sm:$0xff] %v738
        %772 = vst [vmem:[%s216 + $0xd0] sm:$0xff] %v739
        %773 = vst [vmem:[%s216 + $0xd8] sm:$0xff] %v740
        %774 = vst [vmem:[%s216 + $0xe0] sm:$0xff] %v741
        %775 = vst [vmem:[%s216 + $0xe8] sm:$0xff] %v742
        %776 = vst [vmem:[%s216 + $0xf0] sm:$0xff] %v743
        %777 = vst [vmem:[%s216 + $0xf8] sm:$0xff] %v744
        %778 = vst [vmem:[%s216 + $0x100] sm:$0xff] %v745
      $region36: #{a_call__.5} parent=27 // pred_fallthru
        _
      %s779 = smul.u32 33, %s18
      %p780 = scmp.lt.s32.totalorder %s779, 65
      %s781 = scalar_select %p780, %s779, 65
      %p782 = scmp.lt.s32.totalorder %s19, 0
      %s783 = scalar_select %p782, %s19, 0
      %s784 = sadd.s32 %s783, %s781
      %s785 = smul.addr %s784, 8
      %s786 = scalar_lea.vmem %s2, %s785
      // Predicated region
      $region37: #{a_call__.5} parent=27 // pred_check
        %p787 = pneg %p108
      $region38: #{a_call__.5} parent=27 // pred_check_branch
        %789 = sbr.rel (%p787) target = $region40
      $region39: #{a_call__.5} parent=27 // pred_region
        %s790 = smul.u32 33, %s18
      $region40: #{a_call__.5} parent=27 // pred_fallthru
        _
    $region28: #{a_call__.5} parent=5 // pred_fallthru
      _
    %p791 = scmp.le.s32.totalorder 2, %s8
    // Predicated region
    $region41: #{a_call__.5} parent=5 // pred_check
      %p792 = pneg %p791
    $region42: #{a_call__.5} parent=5 // pred_check_branch
      %794 = sbr.rel (%p792) target = $region44
    $region43: #{a_call__.5} parent=5 // pred_region
      %s795 = ssub.s32 %s8, 2
      // Predicated region
      $region45: #{a_call__.5} parent=43 // pred_check
        %p796 = pneg %p114
      $region46: #{a_call__.5} parent=43 // pred_check_branch
        %798 = sbr.rel (%p796) target = $region48
      $region47: #{a_call__.5} parent=43 // pred_region
        %s799 = smul.u32 33, %s21
        %p800 = scmp.lt.s32.totalorder %s799, 65
        %s801 = scalar_select %p800, %s799, 65
        %p802 = scmp.lt.s32.totalorder %s22, 0
        %s803 = scalar_select %p802, %s22, 0
        %s804 = sadd.s32 %s803, %s801
        %s805 = smul.addr %s804, 8
        %s806 = scalar_lea.vmem %s2, %s805
      $region48: #{a_call__.5} parent=43 // pred_fallthru
        _
    $region44: #{a_call__.5} parent=5 // pred_fallthru
      _
  $region6: #{a_call__.5} parent=0 // loop_footer
    %s12 = sadd.s32 1, %s8
  $region7: #{a_call__.5} parent=0 // loop_footer_branch
    %7 = sbr.rel target = $region3
  $region8: #{a_call__.5} parent=0 // loop_exit
    _

</llo_original>
